<compile_context>
chip_gen: v7x
topology: tpu7x:2x2x1
jax: 0.10.0
libtpu: 0.0.40
codegen_flags: <defaults>
</compile_context>

<pallas_src>
import functools

import jax
import jax.numpy as jnp
from jax.experimental import pallas as pl
from jax.experimental.pallas import tpu as pltpu


# ---------------------------- fused Pallas kernel ----------------------------

def _mhesa_kernel(x_ref, w_in_ref, b_in_ref, alpha_ref, log1ma_ref, init_ref,
                  w_out_ref, b_out_ref, o_ref, y_cache, acc_ref, *, n_heads, tn):
    i = pl.program_id(1)                       # sequence (t) tile index
    n, d = y_cache.shape
    hd = d // n_heads
    f32, bf16 = jnp.float32, jnp.bfloat16

    # Per-head smoothing scalars (SMEM), hoisted out of all loops.
    alphas = [alpha_ref[h] for h in range(n_heads)]
    log1mas = [log1ma_ref[h] for h in range(n_heads)]

    # ---- 1. project_in for this t-tile; cache rows in persistent VMEM scratch ----
    y_tile = (jnp.dot(x_ref[0], w_in_ref[...], preferred_element_type=f32)
              + b_in_ref[...])                                             # (tn, d) f32
    row0 = pl.multiple_of(i * tn, tn)
    y_cache[pl.ds(row0, tn), :] = y_tile

    # ---- 2. init accumulator with the folded initial-state term ----
    #   c[h, t] = (1-a)^(t+1) - W[t,0] = (1 - 2a) * (1-a)^t   (rank-1 with init[h, :])
    t_rows = (i * tn + jax.lax.broadcasted_iota(jnp.int32, (tn, 1), 0)).astype(f32)
    for h in range(n_heads):
        c = jnp.exp(t_rows * log1mas[h]) * (1.0 - 2.0 * alphas[h])        # (tn, 1)
        acc_ref[:, h * hd:(h + 1) * hd] = c * init_ref[h:h + 1, :]

    # ---- 3. causal smoothing: reduce over s-tiles 0..i (upper triangle skipped) ----
    iota_t = jax.lax.broadcasted_iota(jnp.int32, (tn, tn), 0)
    iota_s = jax.lax.broadcasted_iota(jnp.int32, (tn, tn), 1)

    def s_step(s, carry):
        col0 = pl.multiple_of(s * tn, tn)
        y_s = y_cache[pl.ds(col0, tn), :].astype(bf16)                    # (tn, d)
        dt = (i * tn + iota_t) - (s * tn + iota_s)                        # t - s
        dtm1 = jnp.maximum(dt - 1, 0).astype(f32)
        on_diag = dt == 0
        below = dt > 0
        for h in range(n_heads):
            a, la = alphas[h], log1mas[h]
            # Closed-form first-difference weights (no cancellation, no HBM weight):
            #   diag = a, below-diag = -a^2 (1-a)^(t-s-1), above-diag = 0.
            w = jnp.where(on_diag, a,
                          jnp.where(below, -(a * a) * jnp.exp(dtm1 * la), 0.0))
            cols = slice(h * hd, (h + 1) * hd)
            acc_ref[:, cols] += jnp.dot(w.astype(bf16), y_s[:, cols],
                                        preferred_element_type=f32)
        return carry

    jax.lax.fori_loop(0, i + 1, s_step, 0)

    # ---- 4. project_out ----
    out = (jnp.dot(acc_ref[...].astype(bf16), w_out_ref[...],
                   preferred_element_type=f32) + b_out_ref[...])          # (tn, d) f32
    o_ref[0] = out.astype(o_ref.dtype)


# ---------------------------- forward wrapper ----------------------------

def _resident_spec(shape):
    """Constant-index_map weight: fetched once, single-buffered (VMEM saver)."""
    nd = len(shape)

    def index_map(bi, ti):
        return (0,) * nd

    try:
        return pl.BlockSpec(shape, index_map, pipeline_mode=pl.Buffered(1))
    except (AttributeError, TypeError):       # fallback if pipeline_mode unsupported
        return pl.BlockSpec(shape, index_map)


def mhesa_forward(x, params, n_heads, *, seq_tile=None):
    b, n, d = x.shape
    assert d % n_heads == 0
    hd = d // n_heads
    f32, bf16 = jnp.float32, jnp.bfloat16

    # Sequence tile: second-minor axis must be a multiple of 8 or the full sequence.
    if seq_tile is None:
        seq_tile = min(n, 256)
    if n % seq_tile != 0 or (seq_tile % 8 != 0 and seq_tile != n):
        seq_tile = n
    tn = seq_tile
    t_tiles = n // tn

    alpha = jax.nn.sigmoid(params["alpha"].astype(f32))        # (h,)
    log1ma = jnp.log1p(-alpha)                                  # log(1 - alpha)
    init_state = params["initial_state"].astype(f32)            # (h, hd)

    x_bf = x.astype(bf16)                                        # halve activation DMA bytes
    w_in = params["w_in"].astype(bf16)
    w_out = params["w_out"].astype(bf16)
    b_in = params["b_in"].reshape(1, d).astype(f32)
    b_out = params["b_out"].reshape(1, d).astype(f32)

    # VMEM budget from the tile plan (weights single-buffered, x/out double-buffered,
    # y-cache + accumulator scratch), with slack; capped under v7x's 64 MiB physical VMEM.
    est = (2 * d * d * 2 + 2 * d * 4                 # w_in/w_out (bf16) + biases (f32)
           + n * d * 4 + tn * d * 4                  # y_cache + acc scratch
           + 2 * tn * d * 2 + 2 * tn * d * 4         # x (bf16) / out (f32) blocks, 2-deep
           + n_heads * hd * 4 + (1 << 16))
    vmem_limit = int(min(max(2 * est, 16 << 20), 64 << 20))

    smem_spec = pl.BlockSpec(memory_space=pltpu.MemorySpace.SMEM)
    kernel = functools.partial(_mhesa_kernel, n_heads=n_heads, tn=tn)

    return pl.pallas_call(
        kernel,
        out_shape=jax.ShapeDtypeStruct((b, n, d), x.dtype),
        grid=(b, t_tiles),
        in_specs=[
            pl.BlockSpec((1, tn, d), lambda bi, ti: (bi, ti, 0)),   # x tile
            _resident_spec((d, d)),                                 # w_in   (resident)
            _resident_spec((1, d)),                                 # b_in   (resident)
            smem_spec,                                              # alpha        (SMEM)
            smem_spec,                                              # log(1-alpha) (SMEM)
            _resident_spec((n_heads, hd)),                          # initial_state
            _resident_spec((d, d)),                                 # w_out  (resident)
            _resident_spec((1, d)),                                 # b_out  (resident)
        ],
        out_specs=pl.BlockSpec((1, tn, d), lambda bi, ti: (bi, ti, 0)),
        scratch_shapes=[
            pltpu.VMEM((n, d), jnp.float32),    # y_cache: project_in rows, reused causally
            pltpu.VMEM((tn, d), jnp.float32),   # smoothing accumulator
        ],
        compiler_params=pltpu.CompilerParams(
            dimension_semantics=("parallel", "arbitrary"),
            vmem_limit_bytes=vmem_limit,
        ),
    )(x_bf, w_in, b_in, alpha, log1ma, init_state, w_out, b_out)


# ---------------------------- reference (pure JAX, f32) ----------------------------

def mhesa_reference(x, params, n_heads):
    b, n, d = x.shape
    hd = d // n_heads
    hp = jax.lax.Precision.HIGHEST
    y = jnp.einsum("bnd,dk->bnk", x, params["w_in"], precision=hp) + params["b_in"]
    xh = y.reshape(b, n, n_heads, hd).transpose(0, 2, 1, 3)
    init = params["initial_state"]
    prev = jnp.concatenate(
        [jnp.broadcast_to(init[None, :, None, :], (b, n_heads, 1, hd)),
         xh[:, :, :-1]], axis=2)
    xd = xh - prev
    alpha = jax.nn.sigmoid(params["alpha"])
    ar = jnp.arange(n)
    tt, ss = ar[:, None], ar[None, :]
    expo = jnp.maximum(tt - ss, 0)
    w = alpha[:, None, None] * (1.0 - alpha)[:, None, None] ** expo[None]
    w = jnp.where((tt - ss)[None] >= 0, w, 0.0)
    out = jnp.einsum("bhnd,hmn->bhmd", xd, w, precision=hp)
    init_weight = (1.0 - alpha)[:, None] ** (ar[None, :] + 1)
    out = out + init_weight[:, :, None] * init[:, None, :]
    out = out.transpose(0, 2, 1, 3).reshape(b, n, d)
    return jnp.einsum("bnd,dk->bnk", out, params["w_out"], precision=hp) + params["b_out"]


# ---------------------------- params ----------------------------

def init_params(key, dim, n_heads):
    hd = dim // n_heads
    ks = jax.random.split(key, 6)
    scale = 1.0 / jnp.sqrt(dim).astype(jnp.float32)
    return {
        "initial_state": jax.random.normal(ks[0], (n_heads, hd), jnp.float32),
        "alpha": jax.random.normal(ks[1], (n_heads,), jnp.float32),
        # stored as (in, out); equivalent to PyTorch's (out, in) with y = x @ W.T + b
        "w_in": jax.random.normal(ks[2], (dim, dim), jnp.float32) * scale,
        "b_in": jax.random.normal(ks[3], (dim,), jnp.float32) * scale,
        "w_out": jax.random.normal(ks[4], (dim, dim), jnp.float32) * scale,
        "b_out": jax.random.normal(ks[5], (dim,), jnp.float32) * scale,
    }


if __name__ == "__main__":
    b, n, d, h = 2, 8, 32, 8
    key = jax.random.PRNGKey(0)
    k_x, k_p = jax.random.split(key)
    x = jax.random.normal(k_x, (b, n, d), jnp.float32)
    params = init_params(k_p, d, h)

    fwd = jax.jit(functools.partial(mhesa_forward, n_heads=h))
    out = jax.block_until_ready(fwd(x, params))

    ref = mhesa_reference(x, params, h)
    assert out.shape == (b, n, d)
    # bf16 MXU operands with f32 accumulation -> compare with a max-normalized relative error.
    denom = float(jnp.maximum(jnp.max(jnp.abs(ref)), 1.0))
    rel = float(jnp.max(jnp.abs(out - ref))) / denom
    if not rel < 5e-2:
        raise AssertionError(f"kernel/reference mismatch: max rel err = {rel}")
    print("KERNEL_OK")
</pallas_src>

<mosaic_0001>
module attributes {stable_mosaic.version = 11 : i64} {
  func.func @_mhesa_kernel(%arg0: i32, %arg1: i32, %arg2: memref<1x8x32xbf16, #tpu.memory_space<vmem>>, %arg3: memref<32x32xbf16, #tpu.memory_space<vmem>>, %arg4: memref<1x32xf32, #tpu.memory_space<vmem>>, %arg5: memref<8xf32, #tpu.memory_space<smem>>, %arg6: memref<8xf32, #tpu.memory_space<smem>>, %arg7: memref<8x4xf32, #tpu.memory_space<vmem>>, %arg8: memref<32x32xbf16, #tpu.memory_space<vmem>>, %arg9: memref<1x32xf32, #tpu.memory_space<vmem>>, %arg10: memref<1x8x32xf32, #tpu.memory_space<vmem>>, %arg11: memref<8x32xf32, #tpu.memory_space<vmem>>, %arg12: memref<8x32xf32, #tpu.memory_space<vmem>>) attributes {dimension_semantics = [#tpu.dimension_semantics<parallel>, #tpu.dimension_semantics<arbitrary>], iteration_bounds = array<i64: 2, 1>, scalar_prefetch = 0 : i64, scratch_operands = 2 : i64, tpu.core_type = #tpu.core_type<tc>, window_params = [{transform_indices = @transform_0, window_bounds = array<i64: 1, 8, 32>}, {pipeline_mode = #tpu.pipeline_mode<synchronous>, transform_indices = @transform_1, window_bounds = array<i64: 32, 32>}, {pipeline_mode = #tpu.pipeline_mode<synchronous>, transform_indices = @transform_2, window_bounds = array<i64: 1, 32>}, {transform_indices = @transform_3, window_bounds = array<i64: 8>}, {transform_indices = @transform_4, window_bounds = array<i64: 8>}, {pipeline_mode = #tpu.pipeline_mode<synchronous>, transform_indices = @transform_5, window_bounds = array<i64: 8, 4>}, {pipeline_mode = #tpu.pipeline_mode<synchronous>, transform_indices = @transform_6, window_bounds = array<i64: 32, 32>}, {pipeline_mode = #tpu.pipeline_mode<synchronous>, transform_indices = @transform_7, window_bounds = array<i64: 1, 32>}, {transform_indices = @transform_8, window_bounds = array<i64: 1, 8, 32>}]} {
    %c0 = arith.constant 0 : index
    %0 = memref.load %arg5[%c0] : memref<8xf32, #tpu.memory_space<smem>>
    %c1 = arith.constant 1 : index
    %1 = memref.load %arg5[%c1] : memref<8xf32, #tpu.memory_space<smem>>
    %c2 = arith.constant 2 : index
    %2 = memref.load %arg5[%c2] : memref<8xf32, #tpu.memory_space<smem>>
    %c3 = arith.constant 3 : index
    %3 = memref.load %arg5[%c3] : memref<8xf32, #tpu.memory_space<smem>>
    %c4 = arith.constant 4 : index
    %4 = memref.load %arg5[%c4] : memref<8xf32, #tpu.memory_space<smem>>
    %c5 = arith.constant 5 : index
    %5 = memref.load %arg5[%c5] : memref<8xf32, #tpu.memory_space<smem>>
    %c6 = arith.constant 6 : index
    %6 = memref.load %arg5[%c6] : memref<8xf32, #tpu.memory_space<smem>>
    %c7 = arith.constant 7 : index
    %7 = memref.load %arg5[%c7] : memref<8xf32, #tpu.memory_space<smem>>
    %c0_0 = arith.constant 0 : index
    %8 = memref.load %arg6[%c0_0] : memref<8xf32, #tpu.memory_space<smem>>
    %c1_1 = arith.constant 1 : index
    %9 = memref.load %arg6[%c1_1] : memref<8xf32, #tpu.memory_space<smem>>
    %c2_2 = arith.constant 2 : index
    %10 = memref.load %arg6[%c2_2] : memref<8xf32, #tpu.memory_space<smem>>
    %c3_3 = arith.constant 3 : index
    %11 = memref.load %arg6[%c3_3] : memref<8xf32, #tpu.memory_space<smem>>
    %c4_4 = arith.constant 4 : index
    %12 = memref.load %arg6[%c4_4] : memref<8xf32, #tpu.memory_space<smem>>
    %c5_5 = arith.constant 5 : index
    %13 = memref.load %arg6[%c5_5] : memref<8xf32, #tpu.memory_space<smem>>
    %c6_6 = arith.constant 6 : index
    %14 = memref.load %arg6[%c6_6] : memref<8xf32, #tpu.memory_space<smem>>
    %c7_7 = arith.constant 7 : index
    %15 = memref.load %arg6[%c7_7] : memref<8xf32, #tpu.memory_space<smem>>
    %c0_8 = arith.constant 0 : index
    %c0_9 = arith.constant 0 : index
    %c0_10 = arith.constant 0 : index
    %16 = vector.load %arg2[%c0_8, %c0_9, %c0_10] : memref<1x8x32xbf16, #tpu.memory_space<vmem>>, vector<1x8x32xbf16>
    %17 = vector.shape_cast %16 : vector<1x8x32xbf16> to vector<8x32xbf16>
    %c0_11 = arith.constant 0 : index
    %c0_12 = arith.constant 0 : index
    %18 = vector.load %arg3[%c0_11, %c0_12] : memref<32x32xbf16, #tpu.memory_space<vmem>>, vector<32x32xbf16>
    %cst = arith.constant dense<0.000000e+00> : vector<8x32xf32>
    %19 = tpu.matmul %17, %18, %cst {dimension_numbers = #tpu.dot_dimension_numbers<[1], [0], [0], [1], [0, 0, 1, 1], [], []>} : vector<8x32xbf16>, vector<32x32xbf16>, vector<8x32xf32> -> vector<8x32xf32>
    %c0_13 = arith.constant 0 : index
    %c0_14 = arith.constant 0 : index
    %20 = vector.load %arg4[%c0_13, %c0_14] : memref<1x32xf32, #tpu.memory_space<vmem>>, vector<1x32xf32>
    %21 = vector.broadcast %20 : vector<1x32xf32> to vector<8x32xf32>
    %22 = arith.addf %19, %21 : vector<8x32xf32>
    %c8_i32 = arith.constant 8 : i32
    %23 = arith.muli %arg1, %c8_i32 : i32
    %24 = tpu.assume_multiple %23, 8 : i32
    %25 = arith.index_cast %24 : i32 to index
    %c0_15 = arith.constant 0 : index
    %26 = vector.load %arg11[%25, %c0_15] : memref<8x32xf32, #tpu.memory_space<vmem>>, vector<8x32xf32>
    tpu.vector_store %arg11[%25, %c0_15], %22 {strides = array<i32>} : memref<8x32xf32, #tpu.memory_space<vmem>>, vector<8x32xf32>,
    %c8_i32_16 = arith.constant 8 : i32
    %27 = arith.muli %arg1, %c8_i32_16 : i32
    %28 = tpu.iota {dimensions = array<i32: 0>} : vector<8x1xi32>
    %29 = vector.broadcast %27 : i32 to vector<8x1xi32>
    %30 = arith.addi %29, %28 : vector<8x1xi32>
    %31 = arith.sitofp %30 : vector<8x1xi32> to vector<8x1xf32>
    %32 = vector.broadcast %8 : f32 to vector<8x1xf32>
    %33 = arith.mulf %31, %32 : vector<8x1xf32>
    %34 = math.exp %33 : vector<8x1xf32>
    %cst_17 = arith.constant 2.000000e+00 : f32
    %35 = arith.mulf %cst_17, %0 : f32
    %cst_18 = arith.constant 1.000000e+00 : f32
    %36 = arith.subf %cst_18, %35 : f32
    %37 = vector.broadcast %36 : f32 to vector<8x1xf32>
    %38 = arith.mulf %34, %37 : vector<8x1xf32>
    %c0_19 = arith.constant 0 : index
    %c0_20 = arith.constant 0 : index
    %39 = vector.load %arg7[%c0_19, %c0_20] : memref<8x4xf32, #tpu.memory_space<vmem>>, vector<1x4xf32>
    %40 = vector.broadcast %38 : vector<8x1xf32> to vector<8x4xf32>
    %41 = vector.broadcast %39 : vector<1x4xf32> to vector<8x4xf32>
    %42 = arith.mulf %40, %41 : vector<8x4xf32>
    %c0_21 = arith.constant 0 : index
    %c0_22 = arith.constant 0 : index
    %43 = vector.load %arg12[%c0_21, %c0_22] : memref<8x32xf32, #tpu.memory_space<vmem>>, vector<8x4xf32>
    tpu.vector_store %arg12[%c0_21, %c0_22], %42 {strides = array<i32>} : memref<8x32xf32, #tpu.memory_space<vmem>>, vector<8x4xf32>,
    %44 = vector.broadcast %9 : f32 to vector<8x1xf32>
    %45 = arith.mulf %31, %44 : vector<8x1xf32>
    %46 = math.exp %45 : vector<8x1xf32>
    %cst_23 = arith.constant 2.000000e+00 : f32
    %47 = arith.mulf %cst_23, %1 : f32
    %cst_24 = arith.constant 1.000000e+00 : f32
    %48 = arith.subf %cst_24, %47 : f32
    %49 = vector.broadcast %48 : f32 to vector<8x1xf32>
    %50 = arith.mulf %46, %49 : vector<8x1xf32>
    %c1_25 = arith.constant 1 : index
    %c0_26 = arith.constant 0 : index
    %51 = vector.load %arg7[%c1_25, %c0_26] : memref<8x4xf32, #tpu.memory_space<vmem>>, vector<1x4xf32>
    %52 = vector.broadcast %50 : vector<8x1xf32> to vector<8x4xf32>
    %53 = vector.broadcast %51 : vector<1x4xf32> to vector<8x4xf32>
    %54 = arith.mulf %52, %53 : vector<8x4xf32>
    %c0_27 = arith.constant 0 : index
    %c4_28 = arith.constant 4 : index
    %55 = vector.load %arg12[%c0_27, %c4_28] : memref<8x32xf32, #tpu.memory_space<vmem>>, vector<8x4xf32>
    tpu.vector_store %arg12[%c0_27, %c4_28], %54 {strides = array<i32>} : memref<8x32xf32, #tpu.memory_space<vmem>>, vector<8x4xf32>,
    %56 = vector.broadcast %10 : f32 to vector<8x1xf32>
    %57 = arith.mulf %31, %56 : vector<8x1xf32>
    %58 = math.exp %57 : vector<8x1xf32>
    %cst_29 = arith.constant 2.000000e+00 : f32
    %59 = arith.mulf %cst_29, %2 : f32
    %cst_30 = arith.constant 1.000000e+00 : f32
    %60 = arith.subf %cst_30, %59 : f32
    %61 = vector.broadcast %60 : f32 to vector<8x1xf32>
    %62 = arith.mulf %58, %61 : vector<8x1xf32>
    %c2_31 = arith.constant 2 : index
    %c0_32 = arith.constant 0 : index
    %63 = vector.load %arg7[%c2_31, %c0_32] : memref<8x4xf32, #tpu.memory_space<vmem>>, vector<1x4xf32>
    %64 = vector.broadcast %62 : vector<8x1xf32> to vector<8x4xf32>
    %65 = vector.broadcast %63 : vector<1x4xf32> to vector<8x4xf32>
    %66 = arith.mulf %64, %65 : vector<8x4xf32>
    %c0_33 = arith.constant 0 : index
    %c8 = arith.constant 8 : index
    %67 = vector.load %arg12[%c0_33, %c8] : memref<8x32xf32, #tpu.memory_space<vmem>>, vector<8x4xf32>
    tpu.vector_store %arg12[%c0_33, %c8], %66 {strides = array<i32>} : memref<8x32xf32, #tpu.memory_space<vmem>>, vector<8x4xf32>,
    %68 = vector.broadcast %11 : f32 to vector<8x1xf32>
    %69 = arith.mulf %31, %68 : vector<8x1xf32>
    %70 = math.exp %69 : vector<8x1xf32>
    %cst_34 = arith.constant 2.000000e+00 : f32
    %71 = arith.mulf %cst_34, %3 : f32
    %cst_35 = arith.constant 1.000000e+00 : f32
    %72 = arith.subf %cst_35, %71 : f32
    %73 = vector.broadcast %72 : f32 to vector<8x1xf32>
    %74 = arith.mulf %70, %73 : vector<8x1xf32>
    %c3_36 = arith.constant 3 : index
    %c0_37 = arith.constant 0 : index
    %75 = vector.load %arg7[%c3_36, %c0_37] : memref<8x4xf32, #tpu.memory_space<vmem>>, vector<1x4xf32>
    %76 = vector.broadcast %74 : vector<8x1xf32> to vector<8x4xf32>
    %77 = vector.broadcast %75 : vector<1x4xf32> to vector<8x4xf32>
    %78 = arith.mulf %76, %77 : vector<8x4xf32>
    %c0_38 = arith.constant 0 : index
    %c12 = arith.constant 12 : index
    %79 = vector.load %arg12[%c0_38, %c12] : memref<8x32xf32, #tpu.memory_space<vmem>>, vector<8x4xf32>
    tpu.vector_store %arg12[%c0_38, %c12], %78 {strides = array<i32>} : memref<8x32xf32, #tpu.memory_space<vmem>>, vector<8x4xf32>,
    %80 = vector.broadcast %12 : f32 to vector<8x1xf32>
    %81 = arith.mulf %31, %80 : vector<8x1xf32>
    %82 = math.exp %81 : vector<8x1xf32>
    %cst_39 = arith.constant 2.000000e+00 : f32
    %83 = arith.mulf %cst_39, %4 : f32
    %cst_40 = arith.constant 1.000000e+00 : f32
    %84 = arith.subf %cst_40, %83 : f32
    %85 = vector.broadcast %84 : f32 to vector<8x1xf32>
    %86 = arith.mulf %82, %85 : vector<8x1xf32>
    %c4_41 = arith.constant 4 : index
    %c0_42 = arith.constant 0 : index
    %87 = vector.load %arg7[%c4_41, %c0_42] : memref<8x4xf32, #tpu.memory_space<vmem>>, vector<1x4xf32>
    %88 = vector.broadcast %86 : vector<8x1xf32> to vector<8x4xf32>
    %89 = vector.broadcast %87 : vector<1x4xf32> to vector<8x4xf32>
    %90 = arith.mulf %88, %89 : vector<8x4xf32>
    %c0_43 = arith.constant 0 : index
    %c16 = arith.constant 16 : index
    %91 = vector.load %arg12[%c0_43, %c16] : memref<8x32xf32, #tpu.memory_space<vmem>>, vector<8x4xf32>
    tpu.vector_store %arg12[%c0_43, %c16], %90 {strides = array<i32>} : memref<8x32xf32, #tpu.memory_space<vmem>>, vector<8x4xf32>,
    %92 = vector.broadcast %13 : f32 to vector<8x1xf32>
    %93 = arith.mulf %31, %92 : vector<8x1xf32>
    %94 = math.exp %93 : vector<8x1xf32>
    %cst_44 = arith.constant 2.000000e+00 : f32
    %95 = arith.mulf %cst_44, %5 : f32
    %cst_45 = arith.constant 1.000000e+00 : f32
    %96 = arith.subf %cst_45, %95 : f32
    %97 = vector.broadcast %96 : f32 to vector<8x1xf32>
    %98 = arith.mulf %94, %97 : vector<8x1xf32>
    %c5_46 = arith.constant 5 : index
    %c0_47 = arith.constant 0 : index
    %99 = vector.load %arg7[%c5_46, %c0_47] : memref<8x4xf32, #tpu.memory_space<vmem>>, vector<1x4xf32>
    %100 = vector.broadcast %98 : vector<8x1xf32> to vector<8x4xf32>
    %101 = vector.broadcast %99 : vector<1x4xf32> to vector<8x4xf32>
    %102 = arith.mulf %100, %101 : vector<8x4xf32>
    %c0_48 = arith.constant 0 : index
    %c20 = arith.constant 20 : index
    %103 = vector.load %arg12[%c0_48, %c20] : memref<8x32xf32, #tpu.memory_space<vmem>>, vector<8x4xf32>
    tpu.vector_store %arg12[%c0_48, %c20], %102 {strides = array<i32>} : memref<8x32xf32, #tpu.memory_space<vmem>>, vector<8x4xf32>,
    %104 = vector.broadcast %14 : f32 to vector<8x1xf32>
    %105 = arith.mulf %31, %104 : vector<8x1xf32>
    %106 = math.exp %105 : vector<8x1xf32>
    %cst_49 = arith.constant 2.000000e+00 : f32
    %107 = arith.mulf %cst_49, %6 : f32
    %cst_50 = arith.constant 1.000000e+00 : f32
    %108 = arith.subf %cst_50, %107 : f32
    %109 = vector.broadcast %108 : f32 to vector<8x1xf32>
    %110 = arith.mulf %106, %109 : vector<8x1xf32>
    %c6_51 = arith.constant 6 : index
    %c0_52 = arith.constant 0 : index
    %111 = vector.load %arg7[%c6_51, %c0_52] : memref<8x4xf32, #tpu.memory_space<vmem>>, vector<1x4xf32>
    %112 = vector.broadcast %110 : vector<8x1xf32> to vector<8x4xf32>
    %113 = vector.broadcast %111 : vector<1x4xf32> to vector<8x4xf32>
    %114 = arith.mulf %112, %113 : vector<8x4xf32>
    %c0_53 = arith.constant 0 : index
    %c24 = arith.constant 24 : index
    %115 = vector.load %arg12[%c0_53, %c24] : memref<8x32xf32, #tpu.memory_space<vmem>>, vector<8x4xf32>
    tpu.vector_store %arg12[%c0_53, %c24], %114 {strides = array<i32>} : memref<8x32xf32, #tpu.memory_space<vmem>>, vector<8x4xf32>,
    %116 = vector.broadcast %15 : f32 to vector<8x1xf32>
    %117 = arith.mulf %31, %116 : vector<8x1xf32>
    %118 = math.exp %117 : vector<8x1xf32>
    %cst_54 = arith.constant 2.000000e+00 : f32
    %119 = arith.mulf %cst_54, %7 : f32
    %cst_55 = arith.constant 1.000000e+00 : f32
    %120 = arith.subf %cst_55, %119 : f32
    %121 = vector.broadcast %120 : f32 to vector<8x1xf32>
    %122 = arith.mulf %118, %121 : vector<8x1xf32>
    %c7_56 = arith.constant 7 : index
    %c0_57 = arith.constant 0 : index
    %123 = vector.load %arg7[%c7_56, %c0_57] : memref<8x4xf32, #tpu.memory_space<vmem>>, vector<1x4xf32>
    %124 = vector.broadcast %122 : vector<8x1xf32> to vector<8x4xf32>
    %125 = vector.broadcast %123 : vector<1x4xf32> to vector<8x4xf32>
    %126 = arith.mulf %124, %125 : vector<8x4xf32>
    %c0_58 = arith.constant 0 : index
    %c28 = arith.constant 28 : index
    %127 = vector.load %arg12[%c0_58, %c28] : memref<8x32xf32, #tpu.memory_space<vmem>>, vector<8x4xf32>
    tpu.vector_store %arg12[%c0_58, %c28], %126 {strides = array<i32>} : memref<8x32xf32, #tpu.memory_space<vmem>>, vector<8x4xf32>,
    %128 = tpu.iota {dimensions = array<i32: 0>} : vector<8x8xi32>
    %129 = tpu.iota {dimensions = array<i32: 1>} : vector<8x8xi32>
    %c1_i32 = arith.constant 1 : i32
    %130 = arith.addi %arg1, %c1_i32 : i32
    %c0_i32 = arith.constant 0 : i32
    %c0_i32_59 = arith.constant 0 : i32
    %131 = arith.subi %130, %c0_i32_59 : i32
    %132 = arith.addi %c0_i32_59, %131 : i32
    %c1_i32_60 = arith.constant 1 : i32
    scf.for %arg13 = %c0_i32_59 to %132 step %c1_i32_60  : i32 {
      %c8_i32_71 = arith.constant 8 : i32
      %143 = arith.muli %arg13, %c8_i32_71 : i32
      %144 = tpu.assume_multiple %143, 8 : i32
      %145 = arith.index_cast %144 : i32 to index
      %c0_72 = arith.constant 0 : index
      %146 = vector.load %arg11[%145, %c0_72] : memref<8x32xf32, #tpu.memory_space<vmem>>, vector<8x32xf32>
      %147 = arith.truncf %146 : vector<8x32xf32> to vector<8x32xbf16>
      %c8_i32_73 = arith.constant 8 : i32
      %148 = arith.muli %arg1, %c8_i32_73 : i32
      %149 = vector.broadcast %148 : i32 to vector<8x8xi32>
      %150 = arith.addi %149, %128 : vector<8x8xi32>
      %c8_i32_74 = arith.constant 8 : i32
      %151 = arith.muli %arg13, %c8_i32_74 : i32
      %152 = vector.broadcast %151 : i32 to vector<8x8xi32>
      %153 = arith.addi %152, %129 : vector<8x8xi32>
      %154 = arith.subi %150, %153 : vector<8x8xi32>
      %c1_i32_75 = arith.constant 1 : i32
      %155 = vector.broadcast %c1_i32_75 : i32 to vector<8x8xi32>
      %156 = arith.subi %154, %155 : vector<8x8xi32>
      %c0_i32_76 = arith.constant 0 : i32
      %157 = vector.broadcast %c0_i32_76 : i32 to vector<8x8xi32>
      %158 = arith.maxsi %156, %157 : vector<8x8xi32>
      %159 = arith.sitofp %158 : vector<8x8xi32> to vector<8x8xf32>
      %c0_i32_77 = arith.constant 0 : i32
      %160 = vector.broadcast %c0_i32_77 : i32 to vector<8x8xi32>
      %161 = arith.cmpi eq, %154, %160 : vector<8x8xi32>
      %c0_i32_78 = arith.constant 0 : i32
      %162 = vector.broadcast %c0_i32_78 : i32 to vector<8x8xi32>
      %163 = arith.cmpi sgt, %154, %162 : vector<8x8xi32>
      %164 = arith.mulf %0, %0 : f32
      %cst_79 = arith.constant 0.000000e+00 : f32
      %165 = arith.subf %cst_79, %164 : f32
      %166 = vector.broadcast %8 : f32 to vector<8x8xf32>
      %167 = arith.mulf %159, %166 : vector<8x8xf32>
      %168 = math.exp %167 : vector<8x8xf32>
      %169 = vector.broadcast %165 : f32 to vector<8x8xf32>
      %170 = arith.mulf %169, %168 : vector<8x8xf32>
      %cst_80 = arith.constant 0.000000e+00 : f32
      %171 = vector.broadcast %cst_80 : f32 to vector<8x8xf32>
      %172 = arith.select %163, %170, %171 : vector<8x8xi1>, vector<8x8xf32>
      %173 = vector.broadcast %0 : f32 to vector<8x8xf32>
      %174 = arith.select %161, %173, %172 : vector<8x8xi1>, vector<8x8xf32>
      %c0_81 = arith.constant 0 : index
      %c0_82 = arith.constant 0 : index
      %175 = vector.load %arg12[%c0_81, %c0_82] : memref<8x32xf32, #tpu.memory_space<vmem>>, vector<8x4xf32>
      %176 = arith.truncf %174 : vector<8x8xf32> to vector<8x8xbf16>
      %177 = vector.extract_strided_slice %147 {offsets = [0, 0], sizes = [8, 4], strides = [1, 1]} : vector<8x32xbf16> to vector<8x4xbf16>
      %cst_83 = arith.constant dense<0.000000e+00> : vector<8x4xf32>
      %178 = tpu.matmul %176, %177, %cst_83 {dimension_numbers = #tpu.dot_dimension_numbers<[1], [0], [0], [1], [0, 0, 1, 1], [], []>} : vector<8x8xbf16>, vector<8x4xbf16>, vector<8x4xf32> -> vector<8x4xf32>
      %179 = arith.addf %175, %178 : vector<8x4xf32>
      %c0_84 = arith.constant 0 : index
      %c0_85 = arith.constant 0 : index
      %180 = vector.load %arg12[%c0_84, %c0_85] : memref<8x32xf32, #tpu.memory_space<vmem>>, vector<8x4xf32>
      tpu.vector_store %arg12[%c0_84, %c0_85], %179 {strides = array<i32>} : memref<8x32xf32, #tpu.memory_space<vmem>>, vector<8x4xf32>,
      %181 = arith.mulf %1, %1 : f32
      %cst_86 = arith.constant 0.000000e+00 : f32
      %182 = arith.subf %cst_86, %181 : f32
      %183 = vector.broadcast %9 : f32 to vector<8x8xf32>
      %184 = arith.mulf %159, %183 : vector<8x8xf32>
      %185 = math.exp %184 : vector<8x8xf32>
      %186 = vector.broadcast %182 : f32 to vector<8x8xf32>
      %187 = arith.mulf %186, %185 : vector<8x8xf32>
      %cst_87 = arith.constant 0.000000e+00 : f32
      %188 = vector.broadcast %cst_87 : f32 to vector<8x8xf32>
      %189 = arith.select %163, %187, %188 : vector<8x8xi1>, vector<8x8xf32>
      %190 = vector.broadcast %1 : f32 to vector<8x8xf32>
      %191 = arith.select %161, %190, %189 : vector<8x8xi1>, vector<8x8xf32>
      %c0_88 = arith.constant 0 : index
      %c4_89 = arith.constant 4 : index
      %192 = vector.load %arg12[%c0_88, %c4_89] : memref<8x32xf32, #tpu.memory_space<vmem>>, vector<8x4xf32>
      %193 = arith.truncf %191 : vector<8x8xf32> to vector<8x8xbf16>
      %194 = vector.extract_strided_slice %147 {offsets = [0, 4], sizes = [8, 4], strides = [1, 1]} : vector<8x32xbf16> to vector<8x4xbf16>
      %cst_90 = arith.constant dense<0.000000e+00> : vector<8x4xf32>
      %195 = tpu.matmul %193, %194, %cst_90 {dimension_numbers = #tpu.dot_dimension_numbers<[1], [0], [0], [1], [0, 0, 1, 1], [], []>} : vector<8x8xbf16>, vector<8x4xbf16>, vector<8x4xf32> -> vector<8x4xf32>
      %196 = arith.addf %192, %195 : vector<8x4xf32>
      %c0_91 = arith.constant 0 : index
      %c4_92 = arith.constant 4 : index
      %197 = vector.load %arg12[%c0_91, %c4_92] : memref<8x32xf32, #tpu.memory_space<vmem>>, vector<8x4xf32>
      tpu.vector_store %arg12[%c0_91, %c4_92], %196 {strides = array<i32>} : memref<8x32xf32, #tpu.memory_space<vmem>>, vector<8x4xf32>,
      %198 = arith.mulf %2, %2 : f32
      %cst_93 = arith.constant 0.000000e+00 : f32
      %199 = arith.subf %cst_93, %198 : f32
      %200 = vector.broadcast %10 : f32 to vector<8x8xf32>
      %201 = arith.mulf %159, %200 : vector<8x8xf32>
      %202 = math.exp %201 : vector<8x8xf32>
      %203 = vector.broadcast %199 : f32 to vector<8x8xf32>
      %204 = arith.mulf %203, %202 : vector<8x8xf32>
      %cst_94 = arith.constant 0.000000e+00 : f32
      %205 = vector.broadcast %cst_94 : f32 to vector<8x8xf32>
      %206 = arith.select %163, %204, %205 : vector<8x8xi1>, vector<8x8xf32>
      %207 = vector.broadcast %2 : f32 to vector<8x8xf32>
      %208 = arith.select %161, %207, %206 : vector<8x8xi1>, vector<8x8xf32>
      %c0_95 = arith.constant 0 : index
      %c8_96 = arith.constant 8 : index
      %209 = vector.load %arg12[%c0_95, %c8_96] : memref<8x32xf32, #tpu.memory_space<vmem>>, vector<8x4xf32>
      %210 = arith.truncf %208 : vector<8x8xf32> to vector<8x8xbf16>
      %211 = vector.extract_strided_slice %147 {offsets = [0, 8], sizes = [8, 4], strides = [1, 1]} : vector<8x32xbf16> to vector<8x4xbf16>
      %cst_97 = arith.constant dense<0.000000e+00> : vector<8x4xf32>
      %212 = tpu.matmul %210, %211, %cst_97 {dimension_numbers = #tpu.dot_dimension_numbers<[1], [0], [0], [1], [0, 0, 1, 1], [], []>} : vector<8x8xbf16>, vector<8x4xbf16>, vector<8x4xf32> -> vector<8x4xf32>
      %213 = arith.addf %209, %212 : vector<8x4xf32>
      %c0_98 = arith.constant 0 : index
      %c8_99 = arith.constant 8 : index
      %214 = vector.load %arg12[%c0_98, %c8_99] : memref<8x32xf32, #tpu.memory_space<vmem>>, vector<8x4xf32>
      tpu.vector_store %arg12[%c0_98, %c8_99], %213 {strides = array<i32>} : memref<8x32xf32, #tpu.memory_space<vmem>>, vector<8x4xf32>,
      %215 = arith.mulf %3, %3 : f32
      %cst_100 = arith.constant 0.000000e+00 : f32
      %216 = arith.subf %cst_100, %215 : f32
      %217 = vector.broadcast %11 : f32 to vector<8x8xf32>
      %218 = arith.mulf %159, %217 : vector<8x8xf32>
      %219 = math.exp %218 : vector<8x8xf32>
      %220 = vector.broadcast %216 : f32 to vector<8x8xf32>
      %221 = arith.mulf %220, %219 : vector<8x8xf32>
      %cst_101 = arith.constant 0.000000e+00 : f32
      %222 = vector.broadcast %cst_101 : f32 to vector<8x8xf32>
      %223 = arith.select %163, %221, %222 : vector<8x8xi1>, vector<8x8xf32>
      %224 = vector.broadcast %3 : f32 to vector<8x8xf32>
      %225 = arith.select %161, %224, %223 : vector<8x8xi1>, vector<8x8xf32>
      %c0_102 = arith.constant 0 : index
      %c12_103 = arith.constant 12 : index
      %226 = vector.load %arg12[%c0_102, %c12_103] : memref<8x32xf32, #tpu.memory_space<vmem>>, vector<8x4xf32>
      %227 = arith.truncf %225 : vector<8x8xf32> to vector<8x8xbf16>
      %228 = vector.extract_strided_slice %147 {offsets = [0, 12], sizes = [8, 4], strides = [1, 1]} : vector<8x32xbf16> to vector<8x4xbf16>
      %cst_104 = arith.constant dense<0.000000e+00> : vector<8x4xf32>
      %229 = tpu.matmul %227, %228, %cst_104 {dimension_numbers = #tpu.dot_dimension_numbers<[1], [0], [0], [1], [0, 0, 1, 1], [], []>} : vector<8x8xbf16>, vector<8x4xbf16>, vector<8x4xf32> -> vector<8x4xf32>
      %230 = arith.addf %226, %229 : vector<8x4xf32>
      %c0_105 = arith.constant 0 : index
      %c12_106 = arith.constant 12 : index
      %231 = vector.load %arg12[%c0_105, %c12_106] : memref<8x32xf32, #tpu.memory_space<vmem>>, vector<8x4xf32>
      tpu.vector_store %arg12[%c0_105, %c12_106], %230 {strides = array<i32>} : memref<8x32xf32, #tpu.memory_space<vmem>>, vector<8x4xf32>,
      %232 = arith.mulf %4, %4 : f32
      %cst_107 = arith.constant 0.000000e+00 : f32
      %233 = arith.subf %cst_107, %232 : f32
      %234 = vector.broadcast %12 : f32 to vector<8x8xf32>
      %235 = arith.mulf %159, %234 : vector<8x8xf32>
      %236 = math.exp %235 : vector<8x8xf32>
      %237 = vector.broadcast %233 : f32 to vector<8x8xf32>
      %238 = arith.mulf %237, %236 : vector<8x8xf32>
      %cst_108 = arith.constant 0.000000e+00 : f32
      %239 = vector.broadcast %cst_108 : f32 to vector<8x8xf32>
      %240 = arith.select %163, %238, %239 : vector<8x8xi1>, vector<8x8xf32>
      %241 = vector.broadcast %4 : f32 to vector<8x8xf32>
      %242 = arith.select %161, %241, %240 : vector<8x8xi1>, vector<8x8xf32>
      %c0_109 = arith.constant 0 : index
      %c16_110 = arith.constant 16 : index
      %243 = vector.load %arg12[%c0_109, %c16_110] : memref<8x32xf32, #tpu.memory_space<vmem>>, vector<8x4xf32>
      %244 = arith.truncf %242 : vector<8x8xf32> to vector<8x8xbf16>
      %245 = vector.extract_strided_slice %147 {offsets = [0, 16], sizes = [8, 4], strides = [1, 1]} : vector<8x32xbf16> to vector<8x4xbf16>
      %cst_111 = arith.constant dense<0.000000e+00> : vector<8x4xf32>
      %246 = tpu.matmul %244, %245, %cst_111 {dimension_numbers = #tpu.dot_dimension_numbers<[1], [0], [0], [1], [0, 0, 1, 1], [], []>} : vector<8x8xbf16>, vector<8x4xbf16>, vector<8x4xf32> -> vector<8x4xf32>
      %247 = arith.addf %243, %246 : vector<8x4xf32>
      %c0_112 = arith.constant 0 : index
      %c16_113 = arith.constant 16 : index
      %248 = vector.load %arg12[%c0_112, %c16_113] : memref<8x32xf32, #tpu.memory_space<vmem>>, vector<8x4xf32>
      tpu.vector_store %arg12[%c0_112, %c16_113], %247 {strides = array<i32>} : memref<8x32xf32, #tpu.memory_space<vmem>>, vector<8x4xf32>,
      %249 = arith.mulf %5, %5 : f32
      %cst_114 = arith.constant 0.000000e+00 : f32
      %250 = arith.subf %cst_114, %249 : f32
      %251 = vector.broadcast %13 : f32 to vector<8x8xf32>
      %252 = arith.mulf %159, %251 : vector<8x8xf32>
      %253 = math.exp %252 : vector<8x8xf32>
      %254 = vector.broadcast %250 : f32 to vector<8x8xf32>
      %255 = arith.mulf %254, %253 : vector<8x8xf32>
      %cst_115 = arith.constant 0.000000e+00 : f32
      %256 = vector.broadcast %cst_115 : f32 to vector<8x8xf32>
      %257 = arith.select %163, %255, %256 : vector<8x8xi1>, vector<8x8xf32>
      %258 = vector.broadcast %5 : f32 to vector<8x8xf32>
      %259 = arith.select %161, %258, %257 : vector<8x8xi1>, vector<8x8xf32>
      %c0_116 = arith.constant 0 : index
      %c20_117 = arith.constant 20 : index
      %260 = vector.load %arg12[%c0_116, %c20_117] : memref<8x32xf32, #tpu.memory_space<vmem>>, vector<8x4xf32>
      %261 = arith.truncf %259 : vector<8x8xf32> to vector<8x8xbf16>
      %262 = vector.extract_strided_slice %147 {offsets = [0, 20], sizes = [8, 4], strides = [1, 1]} : vector<8x32xbf16> to vector<8x4xbf16>
      %cst_118 = arith.constant dense<0.000000e+00> : vector<8x4xf32>
      %263 = tpu.matmul %261, %262, %cst_118 {dimension_numbers = #tpu.dot_dimension_numbers<[1], [0], [0], [1], [0, 0, 1, 1], [], []>} : vector<8x8xbf16>, vector<8x4xbf16>, vector<8x4xf32> -> vector<8x4xf32>
      %264 = arith.addf %260, %263 : vector<8x4xf32>
      %c0_119 = arith.constant 0 : index
      %c20_120 = arith.constant 20 : index
      %265 = vector.load %arg12[%c0_119, %c20_120] : memref<8x32xf32, #tpu.memory_space<vmem>>, vector<8x4xf32>
      tpu.vector_store %arg12[%c0_119, %c20_120], %264 {strides = array<i32>} : memref<8x32xf32, #tpu.memory_space<vmem>>, vector<8x4xf32>,
      %266 = arith.mulf %6, %6 : f32
      %cst_121 = arith.constant 0.000000e+00 : f32
      %267 = arith.subf %cst_121, %266 : f32
      %268 = vector.broadcast %14 : f32 to vector<8x8xf32>
      %269 = arith.mulf %159, %268 : vector<8x8xf32>
      %270 = math.exp %269 : vector<8x8xf32>
      %271 = vector.broadcast %267 : f32 to vector<8x8xf32>
      %272 = arith.mulf %271, %270 : vector<8x8xf32>
      %cst_122 = arith.constant 0.000000e+00 : f32
      %273 = vector.broadcast %cst_122 : f32 to vector<8x8xf32>
      %274 = arith.select %163, %272, %273 : vector<8x8xi1>, vector<8x8xf32>
      %275 = vector.broadcast %6 : f32 to vector<8x8xf32>
      %276 = arith.select %161, %275, %274 : vector<8x8xi1>, vector<8x8xf32>
      %c0_123 = arith.constant 0 : index
      %c24_124 = arith.constant 24 : index
      %277 = vector.load %arg12[%c0_123, %c24_124] : memref<8x32xf32, #tpu.memory_space<vmem>>, vector<8x4xf32>
      %278 = arith.truncf %276 : vector<8x8xf32> to vector<8x8xbf16>
      %279 = vector.extract_strided_slice %147 {offsets = [0, 24], sizes = [8, 4], strides = [1, 1]} : vector<8x32xbf16> to vector<8x4xbf16>
      %cst_125 = arith.constant dense<0.000000e+00> : vector<8x4xf32>
      %280 = tpu.matmul %278, %279, %cst_125 {dimension_numbers = #tpu.dot_dimension_numbers<[1], [0], [0], [1], [0, 0, 1, 1], [], []>} : vector<8x8xbf16>, vector<8x4xbf16>, vector<8x4xf32> -> vector<8x4xf32>
      %281 = arith.addf %277, %280 : vector<8x4xf32>
      %c0_126 = arith.constant 0 : index
      %c24_127 = arith.constant 24 : index
      %282 = vector.load %arg12[%c0_126, %c24_127] : memref<8x32xf32, #tpu.memory_space<vmem>>, vector<8x4xf32>
      tpu.vector_store %arg12[%c0_126, %c24_127], %281 {strides = array<i32>} : memref<8x32xf32, #tpu.memory_space<vmem>>, vector<8x4xf32>,
      %283 = arith.mulf %7, %7 : f32
      %cst_128 = arith.constant 0.000000e+00 : f32
      %284 = arith.subf %cst_128, %283 : f32
      %285 = vector.broadcast %15 : f32 to vector<8x8xf32>
      %286 = arith.mulf %159, %285 : vector<8x8xf32>
      %287 = math.exp %286 : vector<8x8xf32>
      %288 = vector.broadcast %284 : f32 to vector<8x8xf32>
      %289 = arith.mulf %288, %287 : vector<8x8xf32>
      %cst_129 = arith.constant 0.000000e+00 : f32
      %290 = vector.broadcast %cst_129 : f32 to vector<8x8xf32>
      %291 = arith.select %163, %289, %290 : vector<8x8xi1>, vector<8x8xf32>
      %292 = vector.broadcast %7 : f32 to vector<8x8xf32>
      %293 = arith.select %161, %292, %291 : vector<8x8xi1>, vector<8x8xf32>
      %c0_130 = arith.constant 0 : index
      %c28_131 = arith.constant 28 : index
      %294 = vector.load %arg12[%c0_130, %c28_131] : memref<8x32xf32, #tpu.memory_space<vmem>>, vector<8x4xf32>
      %295 = arith.truncf %293 : vector<8x8xf32> to vector<8x8xbf16>
      %296 = vector.extract_strided_slice %147 {offsets = [0, 28], sizes = [8, 4], strides = [1, 1]} : vector<8x32xbf16> to vector<8x4xbf16>
      %cst_132 = arith.constant dense<0.000000e+00> : vector<8x4xf32>
      %297 = tpu.matmul %295, %296, %cst_132 {dimension_numbers = #tpu.dot_dimension_numbers<[1], [0], [0], [1], [0, 0, 1, 1], [], []>} : vector<8x8xbf16>, vector<8x4xbf16>, vector<8x4xf32> -> vector<8x4xf32>
      %298 = arith.addf %294, %297 : vector<8x4xf32>
      %c0_133 = arith.constant 0 : index
      %c28_134 = arith.constant 28 : index
      %299 = vector.load %arg12[%c0_133, %c28_134] : memref<8x32xf32, #tpu.memory_space<vmem>>, vector<8x4xf32>
      tpu.vector_store %arg12[%c0_133, %c28_134], %298 {strides = array<i32>} : memref<8x32xf32, #tpu.memory_space<vmem>>, vector<8x4xf32>,
    }
    %c0_61 = arith.constant 0 : index
    %c0_62 = arith.constant 0 : index
    %133 = vector.load %arg12[%c0_61, %c0_62] : memref<8x32xf32, #tpu.memory_space<vmem>>, vector<8x32xf32>
    %134 = arith.truncf %133 : vector<8x32xf32> to vector<8x32xbf16>
    %c0_63 = arith.constant 0 : index
    %c0_64 = arith.constant 0 : index
    %135 = vector.load %arg8[%c0_63, %c0_64] : memref<32x32xbf16, #tpu.memory_space<vmem>>, vector<32x32xbf16>
    %cst_65 = arith.constant dense<0.000000e+00> : vector<8x32xf32>
    %136 = tpu.matmul %134, %135, %cst_65 {dimension_numbers = #tpu.dot_dimension_numbers<[1], [0], [0], [1], [0, 0, 1, 1], [], []>} : vector<8x32xbf16>, vector<32x32xbf16>, vector<8x32xf32> -> vector<8x32xf32>
    %c0_66 = arith.constant 0 : index
    %c0_67 = arith.constant 0 : index
    %137 = vector.load %arg9[%c0_66, %c0_67] : memref<1x32xf32, #tpu.memory_space<vmem>>, vector<1x32xf32>
    %138 = vector.broadcast %137 : vector<1x32xf32> to vector<8x32xf32>
    %139 = arith.addf %136, %138 : vector<8x32xf32>
    %c0_68 = arith.constant 0 : index
    %c0_69 = arith.constant 0 : index
    %c0_70 = arith.constant 0 : index
    %140 = vector.load %arg10[%c0_68, %c0_69, %c0_70] : memref<1x8x32xf32, #tpu.memory_space<vmem>>, vector<1x8x32xf32>
    %141 = vector.shape_cast %140 : vector<1x8x32xf32> to vector<8x32xf32>
    %142 = vector.shape_cast %139 : vector<8x32xf32> to vector<1x8x32xf32>
    tpu.vector_store %arg10[%c0_68, %c0_69, %c0_70], %142 {strides = array<i32>} : memref<1x8x32xf32, #tpu.memory_space<vmem>>, vector<1x8x32xf32>,
    return
  }
  func.func @transform_0(%arg0: i32, %arg1: i32) -> (i32, i32, i32) {
    %c0_i32 = arith.constant 0 : i32
    %c0_i32_0 = arith.constant 0 : i32
    return %arg0, %arg1, %c0_i32 : i32, i32, i32
  }
  func.func @transform_1(%arg0: i32, %arg1: i32) -> (i32, i32) {
    %c0_i32 = arith.constant 0 : i32
    %c0_i32_0 = arith.constant 0 : i32
    %c0_i32_1 = arith.constant 0 : i32
    return %c0_i32, %c0_i32_0 : i32, i32
  }
  func.func @transform_2(%arg0: i32, %arg1: i32) -> (i32, i32) {
    %c0_i32 = arith.constant 0 : i32
    %c0_i32_0 = arith.constant 0 : i32
    %c0_i32_1 = arith.constant 0 : i32
    return %c0_i32, %c0_i32_0 : i32, i32
  }
  func.func @transform_3(%arg0: i32, %arg1: i32) -> i32 {
    %c0_i32 = arith.constant 0 : i32
    %c0_i32_0 = arith.constant 0 : i32
    return %c0_i32 : i32
  }
  func.func @transform_4(%arg0: i32, %arg1: i32) -> i32 {
    %c0_i32 = arith.constant 0 : i32
    %c0_i32_0 = arith.constant 0 : i32
    return %c0_i32 : i32
  }
  func.func @transform_5(%arg0: i32, %arg1: i32) -> (i32, i32) {
    %c0_i32 = arith.constant 0 : i32
    %c0_i32_0 = arith.constant 0 : i32
    %c0_i32_1 = arith.constant 0 : i32
    return %c0_i32, %c0_i32_0 : i32, i32
  }
  func.func @transform_6(%arg0: i32, %arg1: i32) -> (i32, i32) {
    %c0_i32 = arith.constant 0 : i32
    %c0_i32_0 = arith.constant 0 : i32
    %c0_i32_1 = arith.constant 0 : i32
    return %c0_i32, %c0_i32_0 : i32, i32
  }
  func.func @transform_7(%arg0: i32, %arg1: i32) -> (i32, i32) {
    %c0_i32 = arith.constant 0 : i32
    %c0_i32_0 = arith.constant 0 : i32
    %c0_i32_1 = arith.constant 0 : i32
    return %c0_i32, %c0_i32_0 : i32, i32
  }
  func.func @transform_8(%arg0: i32, %arg1: i32) -> (i32, i32, i32) {
    %c0_i32 = arith.constant 0 : i32
    %c0_i32_0 = arith.constant 0 : i32
    return %arg0, %arg1, %c0_i32 : i32, i32, i32
  }
}

</mosaic_0001>

<llo_original>
// kernel: mhesa_forward.1
$region0: #{mhesa_forward.1}
  #allocation0 [shape = 'u32[]', space=smem, size = 0x4, offset = 0x4, fixed_abs, tag = 'smem constant byte address 0x4 - core index']
  #allocation1 [shape = 'u32[144,128]{1,0:T(1,128)}', space=vmem, size = 0x12000, scoped, tag = 'internal scratch']
  #allocation2 [shape = 'f32[8,32]{1,0:T(8,128)}', space=vmem, size = 0x1000, scoped, tag = 'scratch operand']
  #allocation3 [shape = 'f32[8,32]{1,0:T(8,128)}', space=vmem, size = 0x1000, scoped, tag = 'scratch operand']
  %s0 = inlined_call_operand.vmem [shape: bf16[2,8,32], index: 0, kind: input, shape index: {}]
  %s1 = inlined_call_operand.vmem [shape: bf16[32,32], index: 1, kind: input, shape index: {}]
  %s2 = inlined_call_operand.vmem [shape: f32[1,32], index: 2, kind: input, shape index: {}]
  %s3 = inlined_call_operand.vmem [shape: f32[8], index: 3, kind: input, shape index: {}]
  %s4 = inlined_call_operand.vmem [shape: f32[8], index: 4, kind: input, shape index: {}]
  %s5 = inlined_call_operand.vmem [shape: f32[8,4], index: 5, kind: input, shape index: {}]
  %s6 = inlined_call_operand.vmem [shape: bf16[32,32], index: 6, kind: input, shape index: {}]
  %s7 = inlined_call_operand.vmem [shape: f32[1,32], index: 7, kind: input, shape index: {}]
  %s8 = inlined_call_operand.hbm [shape: f32[2,8,32], index: 8, kind: output, shape index: {}]
  %s9 = sld [smem:[#allocation0]]
  $region80: #{mhesa_forward.1} parent=0
    _
  %s11 = ssub.s32 1, %s9
  %s12 = scalar_select 0, %s11, %s9
  $region1: #{mhesa_forward.1} parent=0
    #allocation4 [shape = 'u8[512]{0}', space=smem, size = 0x200, scoped, tag = 'input window, operand 3, single buffered']
    #allocation5 [shape = 's32[2]{0}', space=sflag, size = 0x8, scoped, tag = 'scoped memory for mhesa_forward.1']
    #allocation6 [shape = 's32[2]{0}', space=sflag, size = 0x8, scoped, tag = 'scoped memory for mhesa_forward.1']
    #allocation7 [shape = 'u8[512]{0}', space=smem, size = 0x200, scoped, tag = 'input window, operand 4, single buffered']
    #allocation8 [shape = 's32[1]{0}', space=sflag, size = 0x4, scoped, tag = 'scoped memory for mhesa_forward.1']
    #allocation9 [shape = 'u8[8192]{0}', space=vmem, size = 0x2000, scoped, tag = 'output window, operand 0']
    %13 = vsyncpa [#allocation6], 0
    %14 = vsyncpa [#allocation8], 0
    %15 = vsyncpa [#allocation5], 0
    %s16 = scalar_lea.sflag [#allocation5], 1
    %17 = vsyncpa %s16, 0
    loop: start=0, step=1, limit=4
    $region2: #{mhesa_forward.1} parent=1 // loop_pre_header
      _
    $region3: #{mhesa_forward.1} parent=1 // loop_header
      %s19 = sphi 0, %s23
      %p20 = scmp.ge.s32.totalorder %s19, 4
      %s26 = sphi 0, %s38
      %s27 = sphi 0, %s34
      %s28 = sphi 0, %s26
      %s29 = sphi 0, %s27
      %s30 = sphi 0, %s28
      %s31 = sphi 0, %s29
      %s43 = sphi 0, %s45
      %s46 = sphi 0, %s43
      %s47 = sphi 0, %s46
      %s63 = sphi 0, %s47
      %s67 = sphi 0, %s67
      %s69 = sphi 0, %s67
      %s70 = sphi 0, %s69
      %s84 = sphi 0, %s70
      %s88 = sphi 0, %s88
      %s90 = sphi 0, %s88
      %s91 = sphi 0, %s90
      %s105 = sphi 0, %s91
      %s109 = sphi 0, %s109
      %s111 = sphi 0, %s109
      %s112 = sphi 0, %s111
      %s126 = sphi 0, %s112
      %s130 = sphi 0, %s130
      %s132 = sphi 0, %s130
      %s133 = sphi 0, %s132
      %s147 = sphi 0, %s133
      %s151 = sphi 0, %s151
      %s153 = sphi 0, %s151
      %s154 = sphi 0, %s153
      %s168 = sphi 0, %s154
      %s172 = sphi 0, %s172
      %s174 = sphi 0, %s172
      %s175 = sphi 0, %s174
      %s189 = sphi 0, %s175
      %s193 = sphi 0, %s193
      %s195 = sphi 0, %s193
      %s196 = sphi 0, %s195
      %s210 = sphi 0, %s196
      %s218 = sphi 0, %s220
      %s221 = sphi 0, %s218
      %s222 = sphi 0, %s221
      %s238 = sphi 0, %s222
    $region4: #{mhesa_forward.1} parent=1 // loop_header_branch
      %22 = sbr.rel (%p20) target = $region8
    $region5: #{mhesa_forward.1} parent=1 // loop_body
      %s24 = ssub.s32 %s19, 1
      %s25 = ssub.s32 %s19, 2
      %s32 = sadd.s32 1, %s27
      %p33 = scmp.ge.s32.totalorder %s32, 1
      %s34 = scalar_select %p33, 0, %s32
      %s35 = sadd.s32 1, %s26
      %s36 = scalar_select %p33, %s35, %s26
      %p37 = scmp.ge.s32.totalorder %s36, 2
      %s38 = scalar_select %p37, 0, %s36
      %s39 = ssub.s32 %s26, %s38
      %s40 = ssub.s32 %s27, %s34
      %s41 = sor.u32 %s39, %s40
      %p42 = scmp.eq.s32.totalorder %s41, 0
      %s44 = sadd.s32 %s43, 1
      %s45 = scalar_select %p42, %s43, %s44
      %p48 = pneg %p42
      %p49 = scmp.eq.s32.totalorder %s19, 1
      %p50 = por %p48, %p49
      %p51 = scmp.ne.s32.totalorder %s43, %s46
      %p52 = scmp.eq.s32.totalorder %s19, 0
      %p53 = por %p51, %p52
      %p54 = scmp.ne.s32.totalorder %s43, %s46
      %p55 = scmp.eq.s32.totalorder %s24, 1
      %p56 = por %p54, %p55
      %p57 = scmp.ne.s32.totalorder %s46, %s47
      %p58 = scmp.eq.s32.totalorder %s24, 0
      %p59 = por %p57, %p58
      %p60 = scmp.ne.s32.totalorder %s46, %s47
      %p61 = scmp.eq.s32.totalorder %s25, 1
      %p62 = por %p60, %p61
      %p64 = scmp.ne.s32.totalorder %s47, %s63
      %p65 = scmp.eq.s32.totalorder %s25, 0
      %p66 = por %p64, %p65
      %s68 = sadd.s32 %s67, 1
      %p71 = scmp.eq.s32.totalorder %s19, 1
      %p72 = scmp.ne.s32.totalorder %s67, %s69
      %p73 = scmp.eq.s32.totalorder %s19, 0
      %p74 = por %p72, %p73
      %p75 = scmp.ne.s32.totalorder %s67, %s69
      %p76 = scmp.eq.s32.totalorder %s24, 1
      %p77 = por %p75, %p76
      %p78 = scmp.ne.s32.totalorder %s69, %s70
      %p79 = scmp.eq.s32.totalorder %s24, 0
      %p80 = por %p78, %p79
      %p81 = scmp.ne.s32.totalorder %s69, %s70
      %p82 = scmp.eq.s32.totalorder %s25, 1
      %p83 = por %p81, %p82
      %p85 = scmp.ne.s32.totalorder %s70, %s84
      %p86 = scmp.eq.s32.totalorder %s25, 0
      %p87 = por %p85, %p86
      %s89 = sadd.s32 %s88, 1
      %p92 = scmp.eq.s32.totalorder %s19, 1
      %p93 = scmp.ne.s32.totalorder %s88, %s90
      %p94 = scmp.eq.s32.totalorder %s19, 0
      %p95 = por %p93, %p94
      %p96 = scmp.ne.s32.totalorder %s88, %s90
      %p97 = scmp.eq.s32.totalorder %s24, 1
      %p98 = por %p96, %p97
      %p99 = scmp.ne.s32.totalorder %s90, %s91
      %p100 = scmp.eq.s32.totalorder %s24, 0
      %p101 = por %p99, %p100
      %p102 = scmp.ne.s32.totalorder %s90, %s91
      %p103 = scmp.eq.s32.totalorder %s25, 1
      %p104 = por %p102, %p103
      %p106 = scmp.ne.s32.totalorder %s91, %s105
      %p107 = scmp.eq.s32.totalorder %s25, 0
      %p108 = por %p106, %p107
      %s110 = sadd.s32 %s109, 1
      %p113 = scmp.eq.s32.totalorder %s19, 1
      %p114 = scmp.ne.s32.totalorder %s109, %s111
      %p115 = scmp.eq.s32.totalorder %s19, 0
      %p116 = por %p114, %p115
      %p117 = scmp.ne.s32.totalorder %s109, %s111
      %p118 = scmp.eq.s32.totalorder %s24, 1
      %p119 = por %p117, %p118
      %p120 = scmp.ne.s32.totalorder %s111, %s112
      %p121 = scmp.eq.s32.totalorder %s24, 0
      %p122 = por %p120, %p121
      %p123 = scmp.ne.s32.totalorder %s111, %s112
      %p124 = scmp.eq.s32.totalorder %s25, 1
      %p125 = por %p123, %p124
      %p127 = scmp.ne.s32.totalorder %s112, %s126
      %p128 = scmp.eq.s32.totalorder %s25, 0
      %p129 = por %p127, %p128
      %s131 = sadd.s32 %s130, 1
      %p134 = scmp.eq.s32.totalorder %s19, 1
      %p135 = scmp.ne.s32.totalorder %s130, %s132
      %p136 = scmp.eq.s32.totalorder %s19, 0
      %p137 = por %p135, %p136
      %p138 = scmp.ne.s32.totalorder %s130, %s132
      %p139 = scmp.eq.s32.totalorder %s24, 1
      %p140 = por %p138, %p139
      %p141 = scmp.ne.s32.totalorder %s132, %s133
      %p142 = scmp.eq.s32.totalorder %s24, 0
      %p143 = por %p141, %p142
      %p144 = scmp.ne.s32.totalorder %s132, %s133
      %p145 = scmp.eq.s32.totalorder %s25, 1
      %p146 = por %p144, %p145
      %p148 = scmp.ne.s32.totalorder %s133, %s147
      %p149 = scmp.eq.s32.totalorder %s25, 0
      %p150 = por %p148, %p149
      %s152 = sadd.s32 %s151, 1
      %p155 = scmp.eq.s32.totalorder %s19, 1
      %p156 = scmp.ne.s32.totalorder %s151, %s153
      %p157 = scmp.eq.s32.totalorder %s19, 0
      %p158 = por %p156, %p157
      %p159 = scmp.ne.s32.totalorder %s151, %s153
      %p160 = scmp.eq.s32.totalorder %s24, 1
      %p161 = por %p159, %p160
      %p162 = scmp.ne.s32.totalorder %s153, %s154
      %p163 = scmp.eq.s32.totalorder %s24, 0
      %p164 = por %p162, %p163
      %p165 = scmp.ne.s32.totalorder %s153, %s154
      %p166 = scmp.eq.s32.totalorder %s25, 1
      %p167 = por %p165, %p166
      %p169 = scmp.ne.s32.totalorder %s154, %s168
      %p170 = scmp.eq.s32.totalorder %s25, 0
      %p171 = por %p169, %p170
      %s173 = sadd.s32 %s172, 1
      %p176 = scmp.eq.s32.totalorder %s19, 1
      %p177 = scmp.ne.s32.totalorder %s172, %s174
      %p178 = scmp.eq.s32.totalorder %s19, 0
      %p179 = por %p177, %p178
      %p180 = scmp.ne.s32.totalorder %s172, %s174
      %p181 = scmp.eq.s32.totalorder %s24, 1
      %p182 = por %p180, %p181
      %p183 = scmp.ne.s32.totalorder %s174, %s175
      %p184 = scmp.eq.s32.totalorder %s24, 0
      %p185 = por %p183, %p184
      %p186 = scmp.ne.s32.totalorder %s174, %s175
      %p187 = scmp.eq.s32.totalorder %s25, 1
      %p188 = por %p186, %p187
      %p190 = scmp.ne.s32.totalorder %s175, %s189
      %p191 = scmp.eq.s32.totalorder %s25, 0
      %p192 = por %p190, %p191
      %s194 = sadd.s32 %s193, 1
      %p197 = scmp.eq.s32.totalorder %s19, 1
      %p198 = scmp.ne.s32.totalorder %s193, %s195
      %p199 = scmp.eq.s32.totalorder %s19, 0
      %p200 = por %p198, %p199
      %p201 = scmp.ne.s32.totalorder %s193, %s195
      %p202 = scmp.eq.s32.totalorder %s24, 1
      %p203 = por %p201, %p202
      %p204 = scmp.ne.s32.totalorder %s195, %s196
      %p205 = scmp.eq.s32.totalorder %s24, 0
      %p206 = por %p204, %p205
      %p207 = scmp.ne.s32.totalorder %s195, %s196
      %p208 = scmp.eq.s32.totalorder %s25, 1
      %p209 = por %p207, %p208
      %p211 = scmp.ne.s32.totalorder %s196, %s210
      %p212 = scmp.eq.s32.totalorder %s25, 0
      %p213 = por %p211, %p212
      %s214 = ssub.s32 %s26, %s38
      %s215 = ssub.s32 %s27, %s34
      %s216 = sor.u32 %s214, %s215
      %p217 = scmp.eq.s32.totalorder %s216, 0
      %s219 = sadd.s32 %s218, 1
      %s220 = scalar_select %p217, %s218, %s219
      %p223 = pneg %p217
      %p224 = scmp.eq.s32.totalorder %s19, 1
      %p225 = por %p223, %p224
      %p226 = scmp.ne.s32.totalorder %s218, %s221
      %p227 = scmp.eq.s32.totalorder %s19, 0
      %p228 = por %p226, %p227
      %p229 = scmp.ne.s32.totalorder %s218, %s221
      %p230 = scmp.eq.s32.totalorder %s24, 1
      %p231 = por %p229, %p230
      %p232 = scmp.ne.s32.totalorder %s221, %s222
      %p233 = scmp.eq.s32.totalorder %s24, 0
      %p234 = por %p232, %p233
      %p235 = scmp.ne.s32.totalorder %s221, %s222
      %p236 = scmp.eq.s32.totalorder %s25, 1
      %p237 = por %p235, %p236
      %p239 = scmp.ne.s32.totalorder %s222, %s238
      %p240 = scmp.eq.s32.totalorder %s25, 0
      %p241 = por %p239, %p240
      %p242 = scmp.le.s32.totalorder 1, %s19
      %p243 = scmp.lt.s32.totalorder %s19, 3
      %p244 = pnand %p242, %p243
      %p245 = pneg %p244
      // Predicated region
      $region9: #{mhesa_forward.1} parent=5 // pred_check
        _
      $region10: #{mhesa_forward.1} parent=5 // pred_check_branch
        %247 = sbr.rel (%p244) target = $region12
      $region11: #{mhesa_forward.1} parent=5 // pred_region
        %s248 = ssub.s32 %s19, 1
        // Predicated region
        $region13: #{mhesa_forward.1} parent=11 // pred_check
          %p249 = pneg %p80
        $region14: #{mhesa_forward.1} parent=11 // pred_check_branch
          %251 = sbr.rel (%p249) target = $region16
        $region15: #{mhesa_forward.1} parent=11 // pred_region
          _
        $region16: #{mhesa_forward.1} parent=11 // pred_fallthru
          _
        // Predicated region
        $region17: #{mhesa_forward.1} parent=11 // pred_check
          %p252 = pneg %p101
        $region18: #{mhesa_forward.1} parent=11 // pred_check_branch
          %254 = sbr.rel (%p252) target = $region20
        $region19: #{mhesa_forward.1} parent=11 // pred_region
          _
        $region20: #{mhesa_forward.1} parent=11 // pred_fallthru
          _
        // Predicated region
        $region21: #{mhesa_forward.1} parent=11 // pred_check
          %p255 = pneg %p122
        $region22: #{mhesa_forward.1} parent=11 // pred_check_branch
          %257 = sbr.rel (%p255) target = $region24
        $region23: #{mhesa_forward.1} parent=11 // pred_region
          %s259 = ssub.s32 16, 16
          %260 = vsyncadd [#allocation6], %s259
          %s262 = sshll.u32 %s3, 4
          %s263 = int_to_ptr.vmem [resolvable:$true] %s262
          %265 = dma.vmem_to_smem %s263, 16, [#allocation4], [#allocation6]
        $region24: #{mhesa_forward.1} parent=11 // pred_fallthru
          _
        // Predicated region
        $region25: #{mhesa_forward.1} parent=11 // pred_check
          %p266 = pneg %p143
        $region26: #{mhesa_forward.1} parent=11 // pred_check_branch
          %268 = sbr.rel (%p266) target = $region28
        $region27: #{mhesa_forward.1} parent=11 // pred_region
          %s270 = ssub.s32 16, 16
          %271 = vsyncadd [#allocation8], %s270
          %s273 = sshll.u32 %s4, 4
          %s274 = int_to_ptr.vmem [resolvable:$true] %s273
          %276 = dma.vmem_to_smem %s274, 16, [#allocation7], [#allocation8]
        $region28: #{mhesa_forward.1} parent=11 // pred_fallthru
          _
        // Predicated region
        $region29: #{mhesa_forward.1} parent=11 // pred_check
          %p277 = pneg %p164
        $region30: #{mhesa_forward.1} parent=11 // pred_check_branch
          %279 = sbr.rel (%p277) target = $region32
        $region31: #{mhesa_forward.1} parent=11 // pred_region
          _
        $region32: #{mhesa_forward.1} parent=11 // pred_fallthru
          _
        // Predicated region
        $region33: #{mhesa_forward.1} parent=11 // pred_check
          %p280 = pneg %p185
        $region34: #{mhesa_forward.1} parent=11 // pred_check_branch
          %282 = sbr.rel (%p280) target = $region36
        $region35: #{mhesa_forward.1} parent=11 // pred_region
          _
        $region36: #{mhesa_forward.1} parent=11 // pred_fallthru
          _
        // Predicated region
        $region37: #{mhesa_forward.1} parent=11 // pred_check
          %p283 = pneg %p206
        $region38: #{mhesa_forward.1} parent=11 // pred_check_branch
          %285 = sbr.rel (%p283) target = $region40
        $region39: #{mhesa_forward.1} parent=11 // pred_region
          _
        $region40: #{mhesa_forward.1} parent=11 // pred_fallthru
          _
      $region12: #{mhesa_forward.1} parent=5 // pred_fallthru
        _
      %p286 = scmp.lt.s32.totalorder %s19, 2
      // Predicated region
      $region41: #{mhesa_forward.1} parent=5 // pred_check
        %p287 = pneg %p286
      $region42: #{mhesa_forward.1} parent=5 // pred_check_branch
        %289 = sbr.rel (%p287) target = $region44
      $region43: #{mhesa_forward.1} parent=5 // pred_region
        // Predicated region
        $region45: #{mhesa_forward.1} parent=43 // pred_check
          %p290 = pneg %p53
        $region46: #{mhesa_forward.1} parent=43 // pred_check_branch
          %292 = sbr.rel (%p290) target = $region48
        $region47: #{mhesa_forward.1} parent=43 // pred_region
          %p293 = scmp.lt.s32.totalorder %s26, 1
          %s294 = scalar_select %p293, %s26, 1
          %p295 = scmp.lt.s32.totalorder %s27, 0
          %s296 = scalar_select %p295, %s27, 0
          %s297 = sadd.s32 %s296, %s294
          %s298 = smul.addr %s297, 4
          %s299 = scalar_lea.vmem %s0, %s298
        $region48: #{mhesa_forward.1} parent=43 // pred_fallthru
          _
      $region44: #{mhesa_forward.1} parent=5 // pred_fallthru
        _
      %p300 = scmp.le.s32.totalorder 1, %s19
      %p301 = scmp.lt.s32.totalorder %s19, 3
      %p302 = pnand %p300, %p301
      %p303 = pneg %p302
      // Predicated region
      $region49: #{mhesa_forward.1} parent=5 // pred_check
        _
      $region50: #{mhesa_forward.1} parent=5 // pred_check_branch
        %305 = sbr.rel (%p302) target = $region52
      $region51: #{mhesa_forward.1} parent=5 // pred_region
        %s306 = ssub.s32 %s19, 1
        // Predicated region
        $region53: #{mhesa_forward.1} parent=51 // pred_check
          %p307 = pneg %p122
        $region54: #{mhesa_forward.1} parent=51 // pred_check_branch
          %309 = sbr.rel (%p307) target = $region56
        $region55: #{mhesa_forward.1} parent=51 // pred_region
          %310 = dma.done [#allocation6], 16
        $region56: #{mhesa_forward.1} parent=51 // pred_fallthru
          _
        // Predicated region
        $region57: #{mhesa_forward.1} parent=51 // pred_check
          %p311 = pneg %p143
        $region58: #{mhesa_forward.1} parent=51 // pred_check_branch
          %313 = sbr.rel (%p311) target = $region60
        $region59: #{mhesa_forward.1} parent=51 // pred_region
          %314 = dma.done [#allocation8], 16
        $region60: #{mhesa_forward.1} parent=51 // pred_fallthru
          _
        %315 = sfence
        %p316 = scmp.lt.s32.totalorder %s28, 1
        %s317 = scalar_select %p316, %s28, 1
        %p318 = scmp.lt.s32.totalorder %s29, 0
        %s319 = scalar_select %p318, %s29, 0
        %s320 = sadd.s32 %s319, %s317
        %s321 = smul.addr %s320, 4
        %s322 = scalar_lea.vmem %s0, %s321
        %p323 = pneg %p59
        %p324 = pneg %p56
        %p325 = pneg %p80
        %p326 = pneg %p77
        %p327 = pneg %p101
        %p328 = pneg %p98
        %p329 = pneg %p122
        %p330 = pneg %p119
        %p331 = pneg %p143
        %p332 = pneg %p140
        %p333 = pneg %p164
        %p334 = pneg %p161
        %p335 = pneg %p185
        %p336 = pneg %p182
        %p337 = pneg %p206
        %p338 = pneg %p203
        %p339 = pneg %p234
        %p340 = pneg %p231
        %s341 = sand.u32 %s221, 1
        %s342 = scalar_lea.sflag [#allocation5], %s341
        %s343 = sand.u32 %s221, 1
        %s344 = smul.addr %s343, 8
        %s345 = scalar_lea.vmem [#allocation9], %s344
        %p346 = scmp.lt.s32.totalorder %s28, 1
        %s347 = scalar_select %p346, %s28, 1
        %p348 = scmp.lt.s32.totalorder %s29, 0
        %s349 = scalar_select %p348, %s29, 0
        %s350 = sadd.s32 %s349, %s347
        %s351 = smul.addr %s350, 4
        %s352 = scalar_lea.vmem %s0, %s351
        %s354 = sld [smem:[#allocation4]]
        %s355 = sld [smem:[#allocation4 + $0x1]]
        %s356 = sld [smem:[#allocation4 + $0x2]]
        %s357 = sld [smem:[#allocation4 + $0x3]]
        %s358 = sld [smem:[#allocation4 + $0x4]]
        %s359 = sld [smem:[#allocation4 + $0x5]]
        %s360 = sld [smem:[#allocation4 + $0x6]]
        %s361 = sld [smem:[#allocation4 + $0x7]]
        %s362 = sld [smem:[#allocation7]]
        %s363 = sld [smem:[#allocation7 + $0x1]]
        %s364 = sld [smem:[#allocation7 + $0x2]]
        %s365 = sld [smem:[#allocation7 + $0x3]]
        %s366 = sld [smem:[#allocation7 + $0x4]]
        %s367 = sld [smem:[#allocation7 + $0x5]]
        %s368 = sld [smem:[#allocation7 + $0x6]]
        %s369 = sld [smem:[#allocation7 + $0x7]]
        %v370 = vld [vmem:[%s352] sm:$0xf]
        %v371 = vld [vmem:[%s1] sm:$0xf]
        %v372 = vld [vmem:[%s1 + $0x4] sm:$0xf]
        %v373 = vld [vmem:[%s1 + $0x8] sm:$0xf]
        %v374 = vld [vmem:[%s1 + $0xc] sm:$0xf]
        %v375 = vld [vmem:[%s2] sm:$0x1]
        %v377 = vlaneseq
        %v378 = vshrl.u32 %v377, 7
        %v379 = vsub.s32 0, %v378
        %v380 = vrot.slane %v375, %v379
        %v386 = vunpack.c.l.b16 %v371
        %v387 = vunpack.c.l.b16 %v372
        %v388 = vunpack.c.l.b16 %v373
        %v389 = vunpack.c.l.b16 %v374
        %v390 = vpack.c.b16 %v387, %v386
        %v391 = vpack.c.b16 %v389, %v388
        %vm394 = vcmask 261120
        %v396 = vsel %vm394, %v370, 0
        %398 = vmatprep.subr.bf16.mxu0 0
        %399 = vmatpush1.bf16.msra.mxu0 %v390
        %400 = vmatprep.subr.bf16.mxu0 0
        %401 = vmatpush1.bf16.msra.mxu0 %v391
        %402 = vmatprep.subr.bf16.mxu0 0
        %403 = vmatpush1.bf16.msra.mxu0 0
        %404 = vmatprep.subr.bf16.mxu0 0
        %405 = vmatpush1.bf16.msra.mxu0 0
        %406 = vmatprep.subr.bf16.mxu0 0
        %407 = vmatpush1.bf16.msra.mxu0 0
        %408 = vmatprep.subr.bf16.mxu0 0
        %409 = vmatpush1.bf16.msra.mxu0 0
        %410 = vmatprep.subr.bf16.mxu0 0
        %411 = vmatpush1.bf16.msra.mxu0 0
        %412 = vmatprep.subr.bf16.mxu0 0
        %413 = vmatpush1.bf16.msra.mxu0 0
        %414 = vmatprep.subr.bf16.mxu0 0
        %415 = vmatpush1.bf16.msra.mxu0 0
        %416 = vmatprep.subr.bf16.mxu0 0
        %417 = vmatpush1.bf16.msra.mxu0 0
        %418 = vmatprep.subr.bf16.mxu0 0
        %419 = vmatpush1.bf16.msra.mxu0 0
        %420 = vmatprep.subr.bf16.mxu0 0
        %421 = vmatpush1.bf16.msra.mxu0 0
        %422 = vmatprep.subr.bf16.mxu0 0
        %423 = vmatpush1.bf16.msra.mxu0 0
        %424 = vmatprep.subr.bf16.mxu0 0
        %425 = vmatpush1.bf16.msra.mxu0 0
        %426 = vmatprep.subr.bf16.mxu0 0
        %427 = vmatpush1.bf16.msra.mxu0 0
        %428 = vmatprep.subr.bf16.mxu0 0
        %429 = vmatpush1.bf16.msra.mxu0 0
        %430 = vmatprep.mubr.bf16.mxu0 0
        %431 = vmatmul.mubr.bf16.gmra.mrb[0].mxu0 %v396
        %v432 = vpop.f32.mrb[0].mxu0
        %v433 = vadd.f32 %v380, %v432
        %v434 = vpop.f32.mrb[0].mxu0
        %v435 = vpop.f32.mrb[0].mxu0
        %v436 = vpop.f32.mrb[0].mxu0
        %437 = vdwg.mxu0
        %s438 = smul.u32 %s29, 8
        %s439 = scalar_lea.vmem [#allocation2], %s438
        %440 = vst.msk [vmem:[%s439] sm:$0xff] %vm394, %v433
        %v441 = vlaneseq
        %v442 = vshrl.u32 %v441, 7
        %v443 = vstv %s438
        %v444 = vadd.s32 %v443, %v442
        %v445 = vcvt.s32.f32 %v444
        %v446 = vstv %s362
        %v447 = vmul.f32 %v445, %v446
        %v448 = vmul.f32 %v447, 1.442695
        %v449 = vpow.pop %v448
        %s450 = smul.f32 %s354, 2.0
        %s451 = ssub.f32 1.0, %s450
        %v452 = vstv %s451
        %v453 = vmul.f32 %v449, %v452
        %v454 = vld [vmem:[%s5] sm:$0x1]
        %v455 = vlaneseq
        %v456 = vshrl.u32 %v455, 7
        %v457 = vsub.s32 0, %v456
        %v458 = vrot.slane %v454, %v457
        %v459 = vmul.f32 %v453, %v458
        %vm460 = vcmask 31744
        %461 = vst.msk [vmem:[#allocation3] sm:$0xff] %vm460, %v459
        %v462 = vstv %s363
        %v463 = vmul.f32 %v445, %v462
        %v464 = vmul.f32 %v463, 1.442695
        %v465 = vpow.pop %v464
        %s466 = smul.f32 %s355, 2.0
        %s467 = ssub.f32 1.0, %s466
        %v468 = vstv %s467
        %v469 = vmul.f32 %v465, %v468
        %v470 = vld [vmem:[%s5 + $0x1] sm:$0x1]
        %v471 = vlaneseq
        %v472 = vshrl.u32 %v471, 7
        %v473 = vsub.s32 0, %v472
        %v474 = vrot.slane %v470, %v473
        %v475 = vmul.f32 %v469, %v474
        %477 = vrot.lane.b32.xlu0 %v475, 4
        %v478 = vpop.permute.xlu0 %477
        %vm480 = vcmask 64544
        %481 = vst.msk [vmem:[#allocation3] sm:$0xff] %vm480, %v478
        %v482 = vstv %s364
        %v483 = vmul.f32 %v445, %v482
        %v484 = vmul.f32 %v483, 1.442695
        %v485 = vpow.pop %v484
        %s486 = smul.f32 %s356, 2.0
        %s487 = ssub.f32 1.0, %s486
        %v488 = vstv %s487
        %v489 = vmul.f32 %v485, %v488
        %v490 = vld [vmem:[%s5 + $0x2] sm:$0x1]
        %v491 = vlaneseq
        %v492 = vshrl.u32 %v491, 7
        %v493 = vsub.s32 0, %v492
        %v494 = vrot.slane %v490, %v493
        %v495 = vmul.f32 %v489, %v494
        %497 = vrot.lane.b32.xlu0 %v495, 8
        %v498 = vpop.permute.xlu0 %497
        %vm500 = vcmask 97344
        %501 = vst.msk [vmem:[#allocation3] sm:$0xff] %vm500, %v498
        %v502 = vstv %s365
        %v503 = vmul.f32 %v445, %v502
        %v504 = vmul.f32 %v503, 1.442695
        %v505 = vpow.pop %v504
        %s506 = smul.f32 %s357, 2.0
        %s507 = ssub.f32 1.0, %s506
        %v508 = vstv %s507
        %v509 = vmul.f32 %v505, %v508
        %v510 = vld [vmem:[%s5 + $0x3] sm:$0x1]
        %v511 = vlaneseq
        %v512 = vshrl.u32 %v511, 7
        %v513 = vsub.s32 0, %v512
        %v514 = vrot.slane %v510, %v513
        %v515 = vmul.f32 %v509, %v514
        %517 = vrot.lane.b32.xlu0 %v515, 12
        %v518 = vpop.permute.xlu0 %517
        %vm520 = vcmask 130144
        %521 = vst.msk [vmem:[#allocation3] sm:$0xff] %vm520, %v518
        %v522 = vstv %s366
        %v523 = vmul.f32 %v445, %v522
        %v524 = vmul.f32 %v523, 1.442695
        %v525 = vpow.pop %v524
        %s526 = smul.f32 %s358, 2.0
        %s527 = ssub.f32 1.0, %s526
        %v528 = vstv %s527
        %v529 = vmul.f32 %v525, %v528
        %v530 = vld [vmem:[%s5 + $0x4] sm:$0x1]
        %v531 = vlaneseq
        %v532 = vshrl.u32 %v531, 7
        %v533 = vsub.s32 0, %v532
        %v534 = vrot.slane %v530, %v533
        %v535 = vmul.f32 %v529, %v534
        %537 = vrot.lane.b32.xlu0 %v535, 16
        %v538 = vpop.permute.xlu0 %537
        %vm540 = vcmask 162944
        %541 = vst.msk [vmem:[#allocation3] sm:$0xff] %vm540, %v538
        %v542 = vstv %s367
        %v543 = vmul.f32 %v445, %v542
        %v544 = vmul.f32 %v543, 1.442695
        %v545 = vpow.pop %v544
        %s546 = smul.f32 %s359, 2.0
        %s547 = ssub.f32 1.0, %s546
        %v548 = vstv %s547
        %v549 = vmul.f32 %v545, %v548
        %v550 = vld [vmem:[%s5 + $0x5] sm:$0x1]
        %v551 = vlaneseq
        %v552 = vshrl.u32 %v551, 7
        %v553 = vsub.s32 0, %v552
        %v554 = vrot.slane %v550, %v553
        %v555 = vmul.f32 %v549, %v554
        %557 = vrot.lane.b32.xlu0 %v555, 20
        %v558 = vpop.permute.xlu0 %557
        %vm560 = vcmask 195744
        %561 = vst.msk [vmem:[#allocation3] sm:$0xff] %vm560, %v558
        %v562 = vstv %s368
        %v563 = vmul.f32 %v445, %v562
        %v564 = vmul.f32 %v563, 1.442695
        %v565 = vpow.pop %v564
        %s566 = smul.f32 %s360, 2.0
        %s567 = ssub.f32 1.0, %s566
        %v568 = vstv %s567
        %v569 = vmul.f32 %v565, %v568
        %v570 = vld [vmem:[%s5 + $0x6] sm:$0x1]
        %v571 = vlaneseq
        %v572 = vshrl.u32 %v571, 7
        %v573 = vsub.s32 0, %v572
        %v574 = vrot.slane %v570, %v573
        %v575 = vmul.f32 %v569, %v574
        %577 = vrot.lane.b32.xlu0 %v575, 24
        %v578 = vpop.permute.xlu0 %577
        %vm580 = vcmask 228544
        %581 = vst.msk [vmem:[#allocation3] sm:$0xff] %vm580, %v578
        %v582 = vstv %s369
        %v583 = vmul.f32 %v445, %v582
        %v584 = vmul.f32 %v583, 1.442695
        %v585 = vpow.pop %v584
        %s586 = smul.f32 %s361, 2.0
        %s587 = ssub.f32 1.0, %s586
        %v588 = vstv %s587
        %v589 = vmul.f32 %v585, %v588
        %v590 = vld [vmem:[%s5 + $0x7] sm:$0x1]
        %v591 = vlaneseq
        %v592 = vshrl.u32 %v591, 7
        %v593 = vsub.s32 0, %v592
        %v594 = vrot.slane %v590, %v593
        %v595 = vmul.f32 %v589, %v594
        %597 = vrot.lane.b32.xlu0 %v595, 28
        %v598 = vpop.permute.xlu0 %597
        %vm600 = vcmask 261344
        %601 = vst.msk [vmem:[#allocation3] sm:$0xff] %vm600, %v598
        %v602 = vlaneseq
        %v603 = vand.u32 %v602, 127
        %s604 = sadd.s32 %s29, 1
        // While loop
        $region61: #{mhesa_forward.1} parent=51 // loop_pre_header
          _
        $region62: #{mhesa_forward.1} parent=51 // loop_header
          %s606 = sphi 0, %s608
          %p607 = scmp.ge.s32.totalorder %s606, %s604
        $region63: #{mhesa_forward.1} parent=51 // loop_header_branch
          %610 = sbr.rel (%p607) target = $region67
        $region64: #{mhesa_forward.1} parent=51 // loop_body
          %s611 = smul.u32 %s606, 8
          %s612 = scalar_lea.vmem [#allocation2], %s611
          %v613 = vld [vmem:[%s612] sm:$0xff]
          %v614 = vpack.c.bf16 %v613, %v613
          %v615 = vstv %s611
          %v616 = vadd.s32 %v615, %v603
          %v617 = vsub.s32 %v444, %v616
          %v618 = vsub.s32 %v617, 1
          %vm619 = vcmp.gt.s32.totalorder %v618, 0
          %v620 = vsel %vm619, %v618, 0
          %v621 = vcvt.s32.f32 %v620
          %vm622 = vcmp.eq.s32.totalorder %v617, 0
          %vm623 = vcmp.gt.s32.totalorder %v617, 0
          %s624 = smul.f32 %s354, %s354
          %s625 = ssub.f32 0.0, %s624
          %v626 = vmul.f32 %v621, %v446
          %v627 = vmul.f32 %v626, 1.442695
          %v628 = vpow.pop %v627
          %v629 = vstv %s625
          %v630 = vmul.f32 %v629, %v628
          %v631 = vsel %vm623, %v630, 0.0
          %v632 = vstv %s354
          %v633 = vsel %vm622, %v632, %v631
          %v634 = vld [vmem:[#allocation3] sm:$0xff]
          %v635 = vpack.c.bf16 %v633, %v633
          %vm636 = vcmask 64512
          %v638 = vsel %vm636, %v635, 0
          %vm640 = vcmask 1043456
          %v642 = vsel %vm640, %v614, 0
          %644 = vmatprep.subr.bf16.mxu0 0
          %645 = vmatpush1.bf16.msra.mxu0 %v642
          %646 = vmatprep.subr.bf16.mxu0 0
          %647 = vmatpush1.bf16.msra.mxu0 0
          %648 = vmatprep.subr.bf16.mxu0 0
          %649 = vmatpush1.bf16.msra.mxu0 0
          %650 = vmatprep.subr.bf16.mxu0 0
          %651 = vmatpush1.bf16.msra.mxu0 0
          %652 = vmatprep.subr.bf16.mxu0 0
          %653 = vmatpush1.bf16.msra.mxu0 0
          %654 = vmatprep.subr.bf16.mxu0 0
          %655 = vmatpush1.bf16.msra.mxu0 0
          %656 = vmatprep.subr.bf16.mxu0 0
          %657 = vmatpush1.bf16.msra.mxu0 0
          %658 = vmatprep.subr.bf16.mxu0 0
          %659 = vmatpush1.bf16.msra.mxu0 0
          %660 = vmatprep.subr.bf16.mxu0 0
          %661 = vmatpush1.bf16.msra.mxu0 0
          %662 = vmatprep.subr.bf16.mxu0 0
          %663 = vmatpush1.bf16.msra.mxu0 0
          %664 = vmatprep.subr.bf16.mxu0 0
          %665 = vmatpush1.bf16.msra.mxu0 0
          %666 = vmatprep.subr.bf16.mxu0 0
          %667 = vmatpush1.bf16.msra.mxu0 0
          %668 = vmatprep.subr.bf16.mxu0 0
          %669 = vmatpush1.bf16.msra.mxu0 0
          %670 = vmatprep.subr.bf16.mxu0 0
          %671 = vmatpush1.bf16.msra.mxu0 0
          %672 = vmatprep.subr.bf16.mxu0 0
          %673 = vmatpush1.bf16.msra.mxu0 0
          %674 = vmatprep.subr.bf16.mxu0 0
          %675 = vmatpush1.bf16.msra.mxu0 0
          %676 = vmatprep.mubr.bf16.mxu0 0
          %677 = vmatmul.mubr.bf16.gmra.mrb[0].mxu0 %v638
          %v678 = vpop.f32.mrb[0].mxu0
          %v679 = vadd.f32 0.0, %v678
          %v680 = vpop.f32.mrb[0].mxu0
          %v681 = vpop.f32.mrb[0].mxu0
          %v682 = vpop.f32.mrb[0].mxu0
          %683 = vdwg.mxu0
          %v684 = vadd.f32 %v634, %v679
          %685 = vst.msk [vmem:[#allocation3] sm:$0xff] %vm460, %v684
          %s686 = smul.f32 %s355, %s355
          %s687 = ssub.f32 0.0, %s686
          %v688 = vmul.f32 %v621, %v462
          %v689 = vmul.f32 %v688, 1.442695
          %v690 = vpow.pop %v689
          %v691 = vstv %s687
          %v692 = vmul.f32 %v691, %v690
          %v693 = vsel %vm623, %v692, 0.0
          %v694 = vstv %s355
          %v695 = vsel %vm622, %v694, %v693
          %v696 = vld [vmem:[#allocation3] sm:$0xff]
          %v697 = vpack.c.bf16 %v695, %v695
          %699 = vrot.lane.b32.xlu0 %v614, 124
          %v700 = vpop.permute.xlu0 %699
          %v702 = vsel %vm636, %v697, 0
          %v705 = vsel %vm640, %v700, 0
          %707 = vmatprep.subr.bf16.mxu0 0
          %708 = vmatpush1.bf16.msra.mxu0 %v705
          %709 = vmatprep.subr.bf16.mxu0 0
          %710 = vmatpush1.bf16.msra.mxu0 0
          %711 = vmatprep.subr.bf16.mxu0 0
          %712 = vmatpush1.bf16.msra.mxu0 0
          %713 = vmatprep.subr.bf16.mxu0 0
          %714 = vmatpush1.bf16.msra.mxu0 0
          %715 = vmatprep.subr.bf16.mxu0 0
          %716 = vmatpush1.bf16.msra.mxu0 0
          %717 = vmatprep.subr.bf16.mxu0 0
          %718 = vmatpush1.bf16.msra.mxu0 0
          %719 = vmatprep.subr.bf16.mxu0 0
          %720 = vmatpush1.bf16.msra.mxu0 0
          %721 = vmatprep.subr.bf16.mxu0 0
          %722 = vmatpush1.bf16.msra.mxu0 0
          %723 = vmatprep.subr.bf16.mxu0 0
          %724 = vmatpush1.bf16.msra.mxu0 0
          %725 = vmatprep.subr.bf16.mxu0 0
          %726 = vmatpush1.bf16.msra.mxu0 0
          %727 = vmatprep.subr.bf16.mxu0 0
          %728 = vmatpush1.bf16.msra.mxu0 0
          %729 = vmatprep.subr.bf16.mxu0 0
          %730 = vmatpush1.bf16.msra.mxu0 0
          %731 = vmatprep.subr.bf16.mxu0 0
          %732 = vmatpush1.bf16.msra.mxu0 0
          %733 = vmatprep.subr.bf16.mxu0 0
          %734 = vmatpush1.bf16.msra.mxu0 0
          %735 = vmatprep.subr.bf16.mxu0 0
          %736 = vmatpush1.bf16.msra.mxu0 0
          %737 = vmatprep.subr.bf16.mxu0 0
          %738 = vmatpush1.bf16.msra.mxu0 0
          %739 = vmatprep.mubr.bf16.mxu0 0
          %740 = vmatmul.mubr.bf16.gmra.mrb[0].mxu0 %v702
          %v741 = vpop.f32.mrb[0].mxu0
          %v742 = vadd.f32 0.0, %v741
          %v743 = vpop.f32.mrb[0].mxu0
          %v744 = vpop.f32.mrb[0].mxu0
          %v745 = vpop.f32.mrb[0].mxu0
          %746 = vdwg.mxu0
          %748 = vrot.lane.b32.xlu0 %v742, 4
          %v749 = vpop.permute.xlu0 %748
          %v751 = vadd.f32 %v696, %v749
          %752 = vst.msk [vmem:[#allocation3] sm:$0xff] %vm480, %v751
          %s753 = smul.f32 %s356, %s356
          %s754 = ssub.f32 0.0, %s753
          %v755 = vmul.f32 %v621, %v482
          %v756 = vmul.f32 %v755, 1.442695
          %v757 = vpow.pop %v756
          %v758 = vstv %s754
          %v759 = vmul.f32 %v758, %v757
          %v760 = vsel %vm623, %v759, 0.0
          %v761 = vstv %s356
          %v762 = vsel %vm622, %v761, %v760
          %v763 = vld [vmem:[#allocation3] sm:$0xff]
          %v764 = vpack.c.bf16 %v762, %v762
          %765 = vrot.lane.b32.xlu0 %v614, 120
          %v766 = vpop.permute.xlu0 %765
          %v768 = vsel %vm636, %v764, 0
          %v771 = vsel %vm640, %v766, 0
          %773 = vmatprep.subr.bf16.mxu0 0
          %774 = vmatpush1.bf16.msra.mxu0 %v771
          %775 = vmatprep.subr.bf16.mxu0 0
          %776 = vmatpush1.bf16.msra.mxu0 0
          %777 = vmatprep.subr.bf16.mxu0 0
          %778 = vmatpush1.bf16.msra.mxu0 0
          %779 = vmatprep.subr.bf16.mxu0 0
          %780 = vmatpush1.bf16.msra.mxu0 0
          %781 = vmatprep.subr.bf16.mxu0 0
          %782 = vmatpush1.bf16.msra.mxu0 0
          %783 = vmatprep.subr.bf16.mxu0 0
          %784 = vmatpush1.bf16.msra.mxu0 0
          %785 = vmatprep.subr.bf16.mxu0 0
          %786 = vmatpush1.bf16.msra.mxu0 0
          %787 = vmatprep.subr.bf16.mxu0 0
          %788 = vmatpush1.bf16.msra.mxu0 0
          %789 = vmatprep.subr.bf16.mxu0 0
          %790 = vmatpush1.bf16.msra.mxu0 0
          %791 = vmatprep.subr.bf16.mxu0 0
          %792 = vmatpush1.bf16.msra.mxu0 0
          %793 = vmatprep.subr.bf16.mxu0 0
          %794 = vmatpush1.bf16.msra.mxu0 0
          %795 = vmatprep.subr.bf16.mxu0 0
          %796 = vmatpush1.bf16.msra.mxu0 0
          %797 = vmatprep.subr.bf16.mxu0 0
          %798 = vmatpush1.bf16.msra.mxu0 0
          %799 = vmatprep.subr.bf16.mxu0 0
          %800 = vmatpush1.bf16.msra.mxu0 0
          %801 = vmatprep.subr.bf16.mxu0 0
          %802 = vmatpush1.bf16.msra.mxu0 0
          %803 = vmatprep.subr.bf16.mxu0 0
          %804 = vmatpush1.bf16.msra.mxu0 0
          %805 = vmatprep.mubr.bf16.mxu0 0
          %806 = vmatmul.mubr.bf16.gmra.mrb[0].mxu0 %v768
          %v807 = vpop.f32.mrb[0].mxu0
          %v808 = vadd.f32 0.0, %v807
          %v809 = vpop.f32.mrb[0].mxu0
          %v810 = vpop.f32.mrb[0].mxu0
          %v811 = vpop.f32.mrb[0].mxu0
          %812 = vdwg.mxu0
          %814 = vrot.lane.b32.xlu0 %v808, 8
          %v815 = vpop.permute.xlu0 %814
          %v817 = vadd.f32 %v763, %v815
          %818 = vst.msk [vmem:[#allocation3] sm:$0xff] %vm500, %v817
          %s819 = smul.f32 %s357, %s357
          %s820 = ssub.f32 0.0, %s819
          %v821 = vmul.f32 %v621, %v502
          %v822 = vmul.f32 %v821, 1.442695
          %v823 = vpow.pop %v822
          %v824 = vstv %s820
          %v825 = vmul.f32 %v824, %v823
          %v826 = vsel %vm623, %v825, 0.0
          %v827 = vstv %s357
          %v828 = vsel %vm622, %v827, %v826
          %v829 = vld [vmem:[#allocation3] sm:$0xff]
          %v830 = vpack.c.bf16 %v828, %v828
          %831 = vrot.lane.b32.xlu0 %v614, 116
          %v832 = vpop.permute.xlu0 %831
          %v834 = vsel %vm636, %v830, 0
          %v837 = vsel %vm640, %v832, 0
          %839 = vmatprep.subr.bf16.mxu0 0
          %840 = vmatpush1.bf16.msra.mxu0 %v837
          %841 = vmatprep.subr.bf16.mxu0 0
          %842 = vmatpush1.bf16.msra.mxu0 0
          %843 = vmatprep.subr.bf16.mxu0 0
          %844 = vmatpush1.bf16.msra.mxu0 0
          %845 = vmatprep.subr.bf16.mxu0 0
          %846 = vmatpush1.bf16.msra.mxu0 0
          %847 = vmatprep.subr.bf16.mxu0 0
          %848 = vmatpush1.bf16.msra.mxu0 0
          %849 = vmatprep.subr.bf16.mxu0 0
          %850 = vmatpush1.bf16.msra.mxu0 0
          %851 = vmatprep.subr.bf16.mxu0 0
          %852 = vmatpush1.bf16.msra.mxu0 0
          %853 = vmatprep.subr.bf16.mxu0 0
          %854 = vmatpush1.bf16.msra.mxu0 0
          %855 = vmatprep.subr.bf16.mxu0 0
          %856 = vmatpush1.bf16.msra.mxu0 0
          %857 = vmatprep.subr.bf16.mxu0 0
          %858 = vmatpush1.bf16.msra.mxu0 0
          %859 = vmatprep.subr.bf16.mxu0 0
          %860 = vmatpush1.bf16.msra.mxu0 0
          %861 = vmatprep.subr.bf16.mxu0 0
          %862 = vmatpush1.bf16.msra.mxu0 0
          %863 = vmatprep.subr.bf16.mxu0 0
          %864 = vmatpush1.bf16.msra.mxu0 0
          %865 = vmatprep.subr.bf16.mxu0 0
          %866 = vmatpush1.bf16.msra.mxu0 0
          %867 = vmatprep.subr.bf16.mxu0 0
          %868 = vmatpush1.bf16.msra.mxu0 0
          %869 = vmatprep.subr.bf16.mxu0 0
          %870 = vmatpush1.bf16.msra.mxu0 0
          %871 = vmatprep.mubr.bf16.mxu0 0
          %872 = vmatmul.mubr.bf16.gmra.mrb[0].mxu0 %v834
          %v873 = vpop.f32.mrb[0].mxu0
          %v874 = vadd.f32 0.0, %v873
          %v875 = vpop.f32.mrb[0].mxu0
          %v876 = vpop.f32.mrb[0].mxu0
          %v877 = vpop.f32.mrb[0].mxu0
          %878 = vdwg.mxu0
          %880 = vrot.lane.b32.xlu0 %v874, 12
          %v881 = vpop.permute.xlu0 %880
          %v883 = vadd.f32 %v829, %v881
          %884 = vst.msk [vmem:[#allocation3] sm:$0xff] %vm520, %v883
          %s885 = smul.f32 %s358, %s358
          %s886 = ssub.f32 0.0, %s885
          %v887 = vmul.f32 %v621, %v522
          %v888 = vmul.f32 %v887, 1.442695
          %v889 = vpow.pop %v888
          %v890 = vstv %s886
          %v891 = vmul.f32 %v890, %v889
          %v892 = vsel %vm623, %v891, 0.0
          %v893 = vstv %s358
          %v894 = vsel %vm622, %v893, %v892
          %v895 = vld [vmem:[#allocation3] sm:$0xff]
          %v896 = vpack.c.bf16 %v894, %v894
          %897 = vrot.lane.b32.xlu0 %v614, 112
          %v898 = vpop.permute.xlu0 %897
          %v900 = vsel %vm636, %v896, 0
          %v903 = vsel %vm640, %v898, 0
          %905 = vmatprep.subr.bf16.mxu0 0
          %906 = vmatpush1.bf16.msra.mxu0 %v903
          %907 = vmatprep.subr.bf16.mxu0 0
          %908 = vmatpush1.bf16.msra.mxu0 0
          %909 = vmatprep.subr.bf16.mxu0 0
          %910 = vmatpush1.bf16.msra.mxu0 0
          %911 = vmatprep.subr.bf16.mxu0 0
          %912 = vmatpush1.bf16.msra.mxu0 0
          %913 = vmatprep.subr.bf16.mxu0 0
          %914 = vmatpush1.bf16.msra.mxu0 0
          %915 = vmatprep.subr.bf16.mxu0 0
          %916 = vmatpush1.bf16.msra.mxu0 0
          %917 = vmatprep.subr.bf16.mxu0 0
          %918 = vmatpush1.bf16.msra.mxu0 0
          %919 = vmatprep.subr.bf16.mxu0 0
          %920 = vmatpush1.bf16.msra.mxu0 0
          %921 = vmatprep.subr.bf16.mxu0 0
          %922 = vmatpush1.bf16.msra.mxu0 0
          %923 = vmatprep.subr.bf16.mxu0 0
          %924 = vmatpush1.bf16.msra.mxu0 0
          %925 = vmatprep.subr.bf16.mxu0 0
          %926 = vmatpush1.bf16.msra.mxu0 0
          %927 = vmatprep.subr.bf16.mxu0 0
          %928 = vmatpush1.bf16.msra.mxu0 0
          %929 = vmatprep.subr.bf16.mxu0 0
          %930 = vmatpush1.bf16.msra.mxu0 0
          %931 = vmatprep.subr.bf16.mxu0 0
          %932 = vmatpush1.bf16.msra.mxu0 0
          %933 = vmatprep.subr.bf16.mxu0 0
          %934 = vmatpush1.bf16.msra.mxu0 0
          %935 = vmatprep.subr.bf16.mxu0 0
          %936 = vmatpush1.bf16.msra.mxu0 0
          %937 = vmatprep.mubr.bf16.mxu0 0
          %938 = vmatmul.mubr.bf16.gmra.mrb[0].mxu0 %v900
          %v939 = vpop.f32.mrb[0].mxu0
          %v940 = vadd.f32 0.0, %v939
          %v941 = vpop.f32.mrb[0].mxu0
          %v942 = vpop.f32.mrb[0].mxu0
          %v943 = vpop.f32.mrb[0].mxu0
          %944 = vdwg.mxu0
          %946 = vrot.lane.b32.xlu0 %v940, 16
          %v947 = vpop.permute.xlu0 %946
          %v949 = vadd.f32 %v895, %v947
          %950 = vst.msk [vmem:[#allocation3] sm:$0xff] %vm540, %v949
          %s951 = smul.f32 %s359, %s359
          %s952 = ssub.f32 0.0, %s951
          %v953 = vmul.f32 %v621, %v542
          %v954 = vmul.f32 %v953, 1.442695
          %v955 = vpow.pop %v954
          %v956 = vstv %s952
          %v957 = vmul.f32 %v956, %v955
          %v958 = vsel %vm623, %v957, 0.0
          %v959 = vstv %s359
          %v960 = vsel %vm622, %v959, %v958
          %v961 = vld [vmem:[#allocation3] sm:$0xff]
          %v962 = vpack.c.bf16 %v960, %v960
          %963 = vrot.lane.b32.xlu0 %v614, 108
          %v964 = vpop.permute.xlu0 %963
          %v966 = vsel %vm636, %v962, 0
          %v969 = vsel %vm640, %v964, 0
          %971 = vmatprep.subr.bf16.mxu0 0
          %972 = vmatpush1.bf16.msra.mxu0 %v969
          %973 = vmatprep.subr.bf16.mxu0 0
          %974 = vmatpush1.bf16.msra.mxu0 0
          %975 = vmatprep.subr.bf16.mxu0 0
          %976 = vmatpush1.bf16.msra.mxu0 0
          %977 = vmatprep.subr.bf16.mxu0 0
          %978 = vmatpush1.bf16.msra.mxu0 0
          %979 = vmatprep.subr.bf16.mxu0 0
          %980 = vmatpush1.bf16.msra.mxu0 0
          %981 = vmatprep.subr.bf16.mxu0 0
          %982 = vmatpush1.bf16.msra.mxu0 0
          %983 = vmatprep.subr.bf16.mxu0 0
          %984 = vmatpush1.bf16.msra.mxu0 0
          %985 = vmatprep.subr.bf16.mxu0 0
          %986 = vmatpush1.bf16.msra.mxu0 0
          %987 = vmatprep.subr.bf16.mxu0 0
          %988 = vmatpush1.bf16.msra.mxu0 0
          %989 = vmatprep.subr.bf16.mxu0 0
          %990 = vmatpush1.bf16.msra.mxu0 0
          %991 = vmatprep.subr.bf16.mxu0 0
          %992 = vmatpush1.bf16.msra.mxu0 0
          %993 = vmatprep.subr.bf16.mxu0 0
          %994 = vmatpush1.bf16.msra.mxu0 0
          %995 = vmatprep.subr.bf16.mxu0 0
          %996 = vmatpush1.bf16.msra.mxu0 0
          %997 = vmatprep.subr.bf16.mxu0 0
          %998 = vmatpush1.bf16.msra.mxu0 0
          %999 = vmatprep.subr.bf16.mxu0 0
          %1000 = vmatpush1.bf16.msra.mxu0 0
          %1001 = vmatprep.subr.bf16.mxu0 0
          %1002 = vmatpush1.bf16.msra.mxu0 0
          %1003 = vmatprep.mubr.bf16.mxu0 0
          %1004 = vmatmul.mubr.bf16.gmra.mrb[0].mxu0 %v966
          %v1005 = vpop.f32.mrb[0].mxu0
          %v1006 = vadd.f32 0.0, %v1005
          %v1007 = vpop.f32.mrb[0].mxu0
          %v1008 = vpop.f32.mrb[0].mxu0
          %v1009 = vpop.f32.mrb[0].mxu0
          %1010 = vdwg.mxu0
          %1012 = vrot.lane.b32.xlu0 %v1006, 20
          %v1013 = vpop.permute.xlu0 %1012
          %v1015 = vadd.f32 %v961, %v1013
          %1016 = vst.msk [vmem:[#allocation3] sm:$0xff] %vm560, %v1015
          %s1017 = smul.f32 %s360, %s360
          %s1018 = ssub.f32 0.0, %s1017
          %v1019 = vmul.f32 %v621, %v562
          %v1020 = vmul.f32 %v1019, 1.442695
          %v1021 = vpow.pop %v1020
          %v1022 = vstv %s1018
          %v1023 = vmul.f32 %v1022, %v1021
          %v1024 = vsel %vm623, %v1023, 0.0
          %v1025 = vstv %s360
          %v1026 = vsel %vm622, %v1025, %v1024
          %v1027 = vld [vmem:[#allocation3] sm:$0xff]
          %v1028 = vpack.c.bf16 %v1026, %v1026
          %1029 = vrot.lane.b32.xlu0 %v614, 104
          %v1030 = vpop.permute.xlu0 %1029
          %v1032 = vsel %vm636, %v1028, 0
          %v1035 = vsel %vm640, %v1030, 0
          %1037 = vmatprep.subr.bf16.mxu0 0
          %1038 = vmatpush1.bf16.msra.mxu0 %v1035
          %1039 = vmatprep.subr.bf16.mxu0 0
          %1040 = vmatpush1.bf16.msra.mxu0 0
          %1041 = vmatprep.subr.bf16.mxu0 0
          %1042 = vmatpush1.bf16.msra.mxu0 0
          %1043 = vmatprep.subr.bf16.mxu0 0
          %1044 = vmatpush1.bf16.msra.mxu0 0
          %1045 = vmatprep.subr.bf16.mxu0 0
          %1046 = vmatpush1.bf16.msra.mxu0 0
          %1047 = vmatprep.subr.bf16.mxu0 0
          %1048 = vmatpush1.bf16.msra.mxu0 0
          %1049 = vmatprep.subr.bf16.mxu0 0
          %1050 = vmatpush1.bf16.msra.mxu0 0
          %1051 = vmatprep.subr.bf16.mxu0 0
          %1052 = vmatpush1.bf16.msra.mxu0 0
          %1053 = vmatprep.subr.bf16.mxu0 0
          %1054 = vmatpush1.bf16.msra.mxu0 0
          %1055 = vmatprep.subr.bf16.mxu0 0
          %1056 = vmatpush1.bf16.msra.mxu0 0
          %1057 = vmatprep.subr.bf16.mxu0 0
          %1058 = vmatpush1.bf16.msra.mxu0 0
          %1059 = vmatprep.subr.bf16.mxu0 0
          %1060 = vmatpush1.bf16.msra.mxu0 0
          %1061 = vmatprep.subr.bf16.mxu0 0
          %1062 = vmatpush1.bf16.msra.mxu0 0
          %1063 = vmatprep.subr.bf16.mxu0 0
          %1064 = vmatpush1.bf16.msra.mxu0 0
          %1065 = vmatprep.subr.bf16.mxu0 0
          %1066 = vmatpush1.bf16.msra.mxu0 0
          %1067 = vmatprep.subr.bf16.mxu0 0
          %1068 = vmatpush1.bf16.msra.mxu0 0
          %1069 = vmatprep.mubr.bf16.mxu0 0
          %1070 = vmatmul.mubr.bf16.gmra.mrb[0].mxu0 %v1032
          %v1071 = vpop.f32.mrb[0].mxu0
          %v1072 = vadd.f32 0.0, %v1071
          %v1073 = vpop.f32.mrb[0].mxu0
          %v1074 = vpop.f32.mrb[0].mxu0
          %v1075 = vpop.f32.mrb[0].mxu0
          %1076 = vdwg.mxu0
          %1078 = vrot.lane.b32.xlu0 %v1072, 24
          %v1079 = vpop.permute.xlu0 %1078
          %v1081 = vadd.f32 %v1027, %v1079
          %1082 = vst.msk [vmem:[#allocation3] sm:$0xff] %vm580, %v1081
          %s1083 = smul.f32 %s361, %s361
          %s1084 = ssub.f32 0.0, %s1083
          %v1085 = vmul.f32 %v621, %v582
          %v1086 = vmul.f32 %v1085, 1.442695
          %v1087 = vpow.pop %v1086
          %v1088 = vstv %s1084
          %v1089 = vmul.f32 %v1088, %v1087
          %v1090 = vsel %vm623, %v1089, 0.0
          %v1091 = vstv %s361
          %v1092 = vsel %vm622, %v1091, %v1090
          %v1093 = vld [vmem:[#allocation3] sm:$0xff]
          %v1094 = vpack.c.bf16 %v1092, %v1092
          %1095 = vrot.lane.b32.xlu0 %v614, 100
          %v1096 = vpop.permute.xlu0 %1095
          %v1098 = vsel %vm636, %v1094, 0
          %v1101 = vsel %vm640, %v1096, 0
          %1103 = vmatprep.subr.bf16.mxu0 0
          %1104 = vmatpush1.bf16.msra.mxu0 %v1101
          %1105 = vmatprep.subr.bf16.mxu0 0
          %1106 = vmatpush1.bf16.msra.mxu0 0
          %1107 = vmatprep.subr.bf16.mxu0 0
          %1108 = vmatpush1.bf16.msra.mxu0 0
          %1109 = vmatprep.subr.bf16.mxu0 0
          %1110 = vmatpush1.bf16.msra.mxu0 0
          %1111 = vmatprep.subr.bf16.mxu0 0
          %1112 = vmatpush1.bf16.msra.mxu0 0
          %1113 = vmatprep.subr.bf16.mxu0 0
          %1114 = vmatpush1.bf16.msra.mxu0 0
          %1115 = vmatprep.subr.bf16.mxu0 0
          %1116 = vmatpush1.bf16.msra.mxu0 0
          %1117 = vmatprep.subr.bf16.mxu0 0
          %1118 = vmatpush1.bf16.msra.mxu0 0
          %1119 = vmatprep.subr.bf16.mxu0 0
          %1120 = vmatpush1.bf16.msra.mxu0 0
          %1121 = vmatprep.subr.bf16.mxu0 0
          %1122 = vmatpush1.bf16.msra.mxu0 0
          %1123 = vmatprep.subr.bf16.mxu0 0
          %1124 = vmatpush1.bf16.msra.mxu0 0
          %1125 = vmatprep.subr.bf16.mxu0 0
          %1126 = vmatpush1.bf16.msra.mxu0 0
          %1127 = vmatprep.subr.bf16.mxu0 0
          %1128 = vmatpush1.bf16.msra.mxu0 0
          %1129 = vmatprep.subr.bf16.mxu0 0
          %1130 = vmatpush1.bf16.msra.mxu0 0
          %1131 = vmatprep.subr.bf16.mxu0 0
          %1132 = vmatpush1.bf16.msra.mxu0 0
          %1133 = vmatprep.subr.bf16.mxu0 0
          %1134 = vmatpush1.bf16.msra.mxu0 0
          %1135 = vmatprep.mubr.bf16.mxu0 0
          %1136 = vmatmul.mubr.bf16.gmra.mrb[0].mxu0 %v1098
          %v1137 = vpop.f32.mrb[0].mxu0
          %v1138 = vadd.f32 0.0, %v1137
          %v1139 = vpop.f32.mrb[0].mxu0
          %v1140 = vpop.f32.mrb[0].mxu0
          %v1141 = vpop.f32.mrb[0].mxu0
          %1142 = vdwg.mxu0
          %1144 = vrot.lane.b32.xlu0 %v1138, 28
          %v1145 = vpop.permute.xlu0 %1144
          %v1147 = vadd.f32 %v1093, %v1145
          %1148 = vst.msk [vmem:[#allocation3] sm:$0xff] %vm600, %v1147
        $region65: #{mhesa_forward.1} parent=51 // loop_footer
          %s608 = sadd.s32 %s606, 1
        $region66: #{mhesa_forward.1} parent=51 // loop_footer_branch
          %605 = sbr.rel target = $region62
        $region67: #{mhesa_forward.1} parent=51 // loop_exit
          _
        %v1149 = vld [vmem:[#allocation3] sm:$0xff]
        %v1150 = vpack.c.bf16 %v1149, %v1149
        %v1151 = vld [vmem:[%s6] sm:$0xf]
        %v1152 = vld [vmem:[%s6 + $0x4] sm:$0xf]
        %v1153 = vld [vmem:[%s6 + $0x8] sm:$0xf]
        %v1154 = vld [vmem:[%s6 + $0xc] sm:$0xf]
        %v1155 = vld [vmem:[%s7] sm:$0x1]
        %v1157 = vlaneseq
        %v1158 = vshrl.u32 %v1157, 7
        %v1159 = vsub.s32 0, %v1158
        %v1160 = vrot.slane %v1155, %v1159
        %v1166 = vunpack.c.l.b16 %v1151
        %v1167 = vunpack.c.l.b16 %v1152
        %v1168 = vunpack.c.l.b16 %v1153
        %v1169 = vunpack.c.l.b16 %v1154
        %v1170 = vpack.c.b16 %v1167, %v1166
        %v1171 = vpack.c.b16 %v1169, %v1168
        %v1175 = vsel %vm394, %v1150, 0
        %1177 = vmatprep.subr.bf16.mxu0 0
        %1178 = vmatpush1.bf16.msra.mxu0 %v1170
        %1179 = vmatprep.subr.bf16.mxu0 0
        %1180 = vmatpush1.bf16.msra.mxu0 %v1171
        %1181 = vmatprep.subr.bf16.mxu0 0
        %1182 = vmatpush1.bf16.msra.mxu0 0
        %1183 = vmatprep.subr.bf16.mxu0 0
        %1184 = vmatpush1.bf16.msra.mxu0 0
        %1185 = vmatprep.subr.bf16.mxu0 0
        %1186 = vmatpush1.bf16.msra.mxu0 0
        %1187 = vmatprep.subr.bf16.mxu0 0
        %1188 = vmatpush1.bf16.msra.mxu0 0
        %1189 = vmatprep.subr.bf16.mxu0 0
        %1190 = vmatpush1.bf16.msra.mxu0 0
        %1191 = vmatprep.subr.bf16.mxu0 0
        %1192 = vmatpush1.bf16.msra.mxu0 0
        %1193 = vmatprep.subr.bf16.mxu0 0
        %1194 = vmatpush1.bf16.msra.mxu0 0
        %1195 = vmatprep.subr.bf16.mxu0 0
        %1196 = vmatpush1.bf16.msra.mxu0 0
        %1197 = vmatprep.subr.bf16.mxu0 0
        %1198 = vmatpush1.bf16.msra.mxu0 0
        %1199 = vmatprep.subr.bf16.mxu0 0
        %1200 = vmatpush1.bf16.msra.mxu0 0
        %1201 = vmatprep.subr.bf16.mxu0 0
        %1202 = vmatpush1.bf16.msra.mxu0 0
        %1203 = vmatprep.subr.bf16.mxu0 0
        %1204 = vmatpush1.bf16.msra.mxu0 0
        %1205 = vmatprep.subr.bf16.mxu0 0
        %1206 = vmatpush1.bf16.msra.mxu0 0
        %1207 = vmatprep.subr.bf16.mxu0 0
        %1208 = vmatpush1.bf16.msra.mxu0 0
        %1209 = vmatprep.mubr.bf16.mxu0 0
        %1210 = vmatmul.mubr.bf16.gmra.mrb[0].mxu0 %v1175
        %v1211 = vpop.f32.mrb[0].mxu0
        %v1212 = vadd.f32 %v1160, %v1211
        %v1213 = vpop.f32.mrb[0].mxu0
        %v1214 = vpop.f32.mrb[0].mxu0
        %v1215 = vpop.f32.mrb[0].mxu0
        %1216 = vdwg.mxu0
        %1217 = vst.msk [vmem:[%s345] sm:$0xff] %vm394, %v1212
        %s1218 = sand.u32 %s221, 1
        %s1219 = scalar_lea.sflag [#allocation5], %s1218
        %s1220 = sand.u32 %s221, 1
        %s1221 = smul.addr %s1220, 8
        %s1222 = scalar_lea.vmem [#allocation9], %s1221
        // Predicated region
        $region68: #{mhesa_forward.1} parent=51 // pred_check
          %p1223 = pneg %p231
        $region69: #{mhesa_forward.1} parent=51 // pred_check_branch
          %1225 = sbr.rel (%p1223) target = $region71
        $region70: #{mhesa_forward.1} parent=51 // pred_region
          %s1227 = ssub.s32 128, 128
          %1228 = vsyncadd %s1219, %s1227
          %s1229 = sadd.s32 %s29, %s28
          %s1230 = smul.addr %s1229, 128
          %s1231 = scalar_lea.hbm %s8, %s1230
          %s1233 = sshll.u32 %s1222, 4
          %s1234 = int_to_ptr.vmem [resolvable:$true] %s1233
          %1236 = dma.vmem_to_hbm [thread:$0]  %s1234, 128, %s1231, %s1219
        $region71: #{mhesa_forward.1} parent=51 // pred_fallthru
          _
      $region52: #{mhesa_forward.1} parent=5 // pred_fallthru
        _
      %p1237 = scmp.le.s32.totalorder 2, %s19
      // Predicated region
      $region72: #{mhesa_forward.1} parent=5 // pred_check
        %p1238 = pneg %p1237
      $region73: #{mhesa_forward.1} parent=5 // pred_check_branch
        %1240 = sbr.rel (%p1238) target = $region75
      $region74: #{mhesa_forward.1} parent=5 // pred_region
        %s1241 = ssub.s32 %s19, 2
        // Predicated region
        $region76: #{mhesa_forward.1} parent=74 // pred_check
          %p1242 = pneg %p237
        $region77: #{mhesa_forward.1} parent=74 // pred_check_branch
          %1244 = sbr.rel (%p1242) target = $region79
        $region78: #{mhesa_forward.1} parent=74 // pred_region
          %s1245 = sand.u32 %s222, 1
          %s1246 = scalar_lea.sflag [#allocation5], %s1245
          %s1247 = sand.u32 %s222, 1
          %s1248 = smul.addr %s1247, 8
          %s1249 = scalar_lea.vmem [#allocation9], %s1248
          %1250 = dma.done %s1246, 128
        $region79: #{mhesa_forward.1} parent=74 // pred_fallthru
          _
      $region75: #{mhesa_forward.1} parent=5 // pred_fallthru
        _
    $region6: #{mhesa_forward.1} parent=1 // loop_footer
      %s23 = sadd.s32 1, %s19
    $region7: #{mhesa_forward.1} parent=1 // loop_footer_branch
      %18 = sbr.rel target = $region3
    $region8: #{mhesa_forward.1} parent=1 // loop_exit
      _
    %1251 = vsyncpa [#allocation5], 1
    %s1252 = scalar_lea.sflag [#allocation5], 1
    %1253 = vsyncpa %s1252, 1
    %1254 = vsyncpa [#allocation6], 1
    %s1255 = scalar_lea.sflag [#allocation6], 1
    %1256 = vsyncpa %s1255, 1
    %1257 = vsyncpa [#allocation8], 1

</llo_original>
